<compile_context>
chip_gen: v6e
topology: v6e:2x2x1
jax: 0.10.0
libtpu: 0.0.40
codegen_flags: <defaults>
</compile_context>

<pallas_src>
import functools

import jax
import jax.numpy as jnp
from jax.experimental import pallas as pl
from jax.experimental.pallas import tpu as pltpu


# ----------------------------------------------------------------------------
# Tiling helper: largest "nice" tile that exactly divides `dim`
# (or the full dim, which is always a legal block extent).
# ----------------------------------------------------------------------------
def _pick_tile(dim, desired, quantum):
    if dim <= desired:
        return dim
    t = desired
    while t >= quantum:
        if dim % t == 0:
            return t
        t //= 2
    return dim


# ----------------------------------------------------------------------------
# Fused LoRA linear kernel:  y = x @ Wt + (x @ At) @ Bt_scaled (+ bias)
#   grid = (M tiles, Nout tiles, K tiles)  -- K innermost ("arbitrary")
# ----------------------------------------------------------------------------
def _lora_linear_kernel(*refs, has_bias):
    if has_bias:
        x_ref, wt_ref, at_ref, bt_ref, b_ref, o_ref, acc_ref, mid_ref = refs
    else:
        x_ref, wt_ref, at_ref, bt_ref, o_ref, acc_ref, mid_ref = refs
        b_ref = None

    k = pl.program_id(2)

    @pl.when(k == 0)
    def _init():
        acc_ref[...] = jnp.zeros_like(acc_ref)
        mid_ref[...] = jnp.zeros_like(mid_ref)

    x = x_ref[...]                                                   # (tm, tk) bf16
    acc_ref[...] += jnp.dot(x, wt_ref[...], preferred_element_type=jnp.float32)
    mid_ref[...] += jnp.dot(x, at_ref[...], preferred_element_type=jnp.float32)

    @pl.when(k == pl.num_programs(2) - 1)
    def _finalize():
        # LoRA up-projection (scaling already folded into Bt) + optional bias.
        y = acc_ref[...] + jnp.dot(mid_ref[...].astype(bt_ref.dtype), bt_ref[...],
                                   preferred_element_type=jnp.float32)
        if has_bias:
            y = y + b_ref[...].astype(jnp.float32)
        o_ref[...] = y.astype(o_ref.dtype)


def lora_linear(x2d, wt, at, bt_scaled, bias=None, *, out_dtype=jnp.bfloat16,
                tm_desired=256, tn_desired=256, tk_desired=512):
    """x2d:(M,K)  wt:(K,Nout)  at:(K,r)  bt_scaled:(r,Nout)  bias:(Nout,)|None."""
    M, K = x2d.shape
    Nout = wt.shape[1]
    r = at.shape[1]

    tm = _pick_tile(M, tm_desired, 8)
    tn = _pick_tile(Nout, tn_desired, 128)
    tk = _pick_tile(K, tk_desired, 128)
    grid = (M // tm, Nout // tn, K // tk)

    in_specs = [
        pl.BlockSpec((tm, tk), lambda i, j, k: (i, k)),
        pl.BlockSpec((tk, tn), lambda i, j, k: (k, j)),
        pl.BlockSpec((tk, r), lambda i, j, k: (k, 0)),
        pl.BlockSpec((r, tn), lambda i, j, k: (0, j)),
    ]
    args = [x2d, wt, at, bt_scaled]
    if bias is not None:
        in_specs.append(pl.BlockSpec((1, tn), lambda i, j, k: (0, j)))
        args.append(bias.reshape(1, Nout))

    kernel = functools.partial(_lora_linear_kernel, has_bias=bias is not None)
    return pl.pallas_call(
        kernel,
        out_shape=jax.ShapeDtypeStruct((M, Nout), out_dtype),
        grid=grid,
        in_specs=in_specs,
        out_specs=pl.BlockSpec((tm, tn), lambda i, j, k: (i, j)),
        scratch_shapes=[pltpu.VMEM((tm, tn), jnp.float32),
                        pltpu.VMEM((tm, r), jnp.float32)],
        compiler_params=pltpu.CompilerParams(
            dimension_semantics=("parallel", "parallel", "arbitrary"),
            vmem_limit_bytes=48 * 1024 * 1024),
    )(*args)


# ----------------------------------------------------------------------------
# Flash attention (online softmax, KV axis tiled as grid reduction)
#   grid = (B, H, Nq tiles, Nkv tiles)
# ----------------------------------------------------------------------------
def _flash_attention_kernel(q_ref, k_ref, v_ref, o_ref, m_ref, l_ref, acc_ref,
                            *, scale):
    kv = pl.program_id(3)

    @pl.when(kv == 0)
    def _init():
        m_ref[...] = jnp.full_like(m_ref, -jnp.inf)
        l_ref[...] = jnp.zeros_like(l_ref)
        acc_ref[...] = jnp.zeros_like(acc_ref)

    q = q_ref[0, 0]                                                  # (tq, hd)
    k = k_ref[0, 0]                                                  # (tk, hd)
    v = v_ref[0, 0]                                                  # (tk, hd)

    # s[i, j] = sum_d q[i, d] * k[j, d]   (contract hd on both; no K^T tile)
    s = jax.lax.dot_general(q, k, (((1,), (1,)), ((), ())),
                            preferred_element_type=jnp.float32) * scale  # (tq, tk)

    m_prev = m_ref[...]                                              # (tq, 1)
    m_new = jnp.maximum(m_prev, jnp.max(s, axis=-1, keepdims=True))
    alpha = jnp.exp(m_prev - m_new)
    p = jnp.exp(s - m_new)
    l_ref[...] = alpha * l_ref[...] + jnp.sum(p, axis=-1, keepdims=True)
    acc_ref[...] = alpha * acc_ref[...] + jnp.dot(
        p.astype(v.dtype), v, preferred_element_type=jnp.float32)
    m_ref[...] = m_new

    @pl.when(kv == pl.num_programs(3) - 1)
    def _finalize():
        inv_l = pl.reciprocal(l_ref[...], approx=True)
        o_ref[0, 0] = (acc_ref[...] * inv_l).astype(o_ref.dtype)


def flash_attention(q, k, v, scale, *, tq_desired=256, tk_desired=512):
    """q,k,v: (B, H, N, hd) -> (B, H, N, hd)."""
    B, H, N, hd = q.shape
    tq = _pick_tile(N, tq_desired, 8)
    tk = _pick_tile(N, tk_desired, 8)
    grid = (B, H, N // tq, N // tk)

    q_spec = pl.BlockSpec((1, 1, tq, hd), lambda b, h, qi, ki: (b, h, qi, 0))
    kv_spec = pl.BlockSpec((1, 1, tk, hd), lambda b, h, qi, ki: (b, h, ki, 0))
    o_spec = pl.BlockSpec((1, 1, tq, hd), lambda b, h, qi, ki: (b, h, qi, 0))

    kernel = functools.partial(_flash_attention_kernel, scale=scale)
    return pl.pallas_call(
        kernel,
        out_shape=jax.ShapeDtypeStruct((B, H, N, hd), q.dtype),
        grid=grid,
        in_specs=[q_spec, kv_spec, kv_spec],
        out_specs=o_spec,
        scratch_shapes=[pltpu.VMEM((tq, 1), jnp.float32),
                        pltpu.VMEM((tq, 1), jnp.float32),
                        pltpu.VMEM((tq, hd), jnp.float32)],
        compiler_params=pltpu.CompilerParams(
            dimension_semantics=("parallel", "parallel", "parallel", "arbitrary"),
            vmem_limit_bytes=48 * 1024 * 1024),
    )(q, k, v)


# ----------------------------------------------------------------------------
# Forward pass
# ----------------------------------------------------------------------------
def lora_attention_forward(x, params, num_heads, *, compute_dtype=jnp.bfloat16):
    """Forward pass of LoraAttention.  x: (B, N, C)."""
    B, N, C = x.shape
    head_dim = C // num_heads
    scale = head_dim ** (-0.5)
    scaling = params["lora_scaling"]
    cd = compute_dtype

    x2d = x.reshape(B * N, C).astype(cd)

    # Pre-transpose weights once (MXU consumes (Cin,Cout) directly, no in-kernel
    # transposes) and fold the loralib scaling (alpha / r) into lora_B.
    qkv_wt = params["qkv_w"].T.astype(cd)                     # (C, 3C)
    qkv_at = params["qkv_lora_a"].T.astype(cd)                # (C, r)
    qkv_bt = (scaling * params["qkv_lora_b"]).T.astype(cd)    # (r, 3C)
    proj_wt = params["proj_w"].T.astype(cd)                   # (C, C)
    proj_at = params["proj_lora_a"].T.astype(cd)              # (C, r)
    proj_bt = (scaling * params["proj_lora_b"]).T.astype(cd)  # (r, C)
    proj_b = params["proj_b"].astype(jnp.float32)             # (C,)

    # qkv LoRA linear (qkv_bias=False -> the zero bias is skipped entirely).
    qkv = lora_linear(x2d, qkv_wt, qkv_at, qkv_bt, bias=None, out_dtype=cd)  # (M, 3C)

    # Head split (bf16, so the relayout moves half the bytes of the f32 version).
    # TODO(synk): fold this relayout and the one after attention into the
    # BlockSpec index maps (per-head column tiles) to save the HBM round trips.
    qkv = qkv.reshape(B, N, 3, num_heads, head_dim).transpose(2, 0, 3, 1, 4)
    q, k, v = qkv[0], qkv[1], qkv[2]
    # q_norm / k_norm are nn.Identity (qk_norm=False default)

    attn = flash_attention(q, k, v, scale)                    # (B, H, N, hd)
    attn2d = attn.transpose(0, 2, 1, 3).reshape(B * N, C)

    # proj LoRA linear (bias=True); accumulate f32, emit the input dtype.
    out = lora_linear(attn2d, proj_wt, proj_at, proj_bt, bias=proj_b,
                      out_dtype=x.dtype)
    # attn_drop / proj_drop: p=0.0 (eval) -> no-op
    return out.reshape(B, N, C)


# ----------------------------------------------------------------------------
# Pure-JAX reference (f32) for correctness checking
# ----------------------------------------------------------------------------
def _reference(x, params, num_heads):
    B, N, C = x.shape
    hd = C // num_heads
    s = params["lora_scaling"]

    def lin(xx, w, b, a, bl):
        return xx @ w.T + b + s * ((xx @ a.T) @ bl.T)

    qkv = lin(x, params["qkv_w"], 0.0, params["qkv_lora_a"], params["qkv_lora_b"])
    qkv = qkv.reshape(B, N, 3, num_heads, hd).transpose(2, 0, 3, 1, 4)
    q, k, v = qkv[0], qkv[1], qkv[2]
    att = jax.nn.softmax((q * hd ** (-0.5)) @ jnp.swapaxes(k, -1, -2), axis=-1)
    o = (att @ v).transpose(0, 2, 1, 3).reshape(B, N, C)
    return lin(o, params["proj_w"], params["proj_b"],
               params["proj_lora_a"], params["proj_lora_b"])


# ----------------------------------------------------------------------------
# Deterministic parameter init + driver
# ----------------------------------------------------------------------------
def init_params(key, dim, lora_rank):
    ks = jax.random.split(key, 8)
    f32 = jnp.float32
    return {
        # lora.Linear(dim, 3*dim, bias=False, r=8)
        "qkv_w": jax.random.normal(ks[0], (3 * dim, dim), f32) * 0.02,
        "qkv_lora_a": jax.random.normal(ks[1], (lora_rank, dim), f32) * 0.02,
        "qkv_lora_b": jax.random.normal(ks[2], (3 * dim, lora_rank), f32) * 0.02,
        # lora.Linear(dim, dim, r=8) (bias=True)
        "proj_w": jax.random.normal(ks[3], (dim, dim), f32) * 0.02,
        "proj_b": jax.random.normal(ks[4], (dim,), f32) * 0.02,
        "proj_lora_a": jax.random.normal(ks[5], (lora_rank, dim), f32) * 0.02,
        "proj_lora_b": jax.random.normal(ks[6], (dim, lora_rank), f32) * 0.02,
        # loralib default lora_alpha=1 -> scaling = 1 / r
        "lora_scaling": 1.0 / lora_rank,
    }


if __name__ == "__main__":
    B, N, dim = 2, 8, 32
    num_heads = 8
    lora_rank = 8

    key = jax.random.PRNGKey(0)
    kx, kp = jax.random.split(key)
    x = jax.random.normal(kx, (B, N, dim), jnp.float32)
    params = init_params(kp, dim, lora_rank)

    fwd = jax.jit(lora_attention_forward, static_argnums=(2,))
    out = jax.block_until_ready(fwd(x, params, num_heads))

    assert out.shape == (B, N, dim), out.shape
    assert bool(jnp.all(jnp.isfinite(out)))

    ref = _reference(x, params, num_heads)
    max_err = float(jnp.max(jnp.abs(out - ref)))
    assert max_err < 2e-2, f"max abs err {max_err}"
    print("KERNEL_OK")
</pallas_src>

<mosaic_0001>
module attributes {stable_mosaic.version = 11 : i64} {
  func.func @_lora_linear_kernel(%arg0: i32, %arg1: i32, %arg2: i32, %arg3: memref<16x32xbf16, #tpu.memory_space<vmem>>, %arg4: memref<32x96xbf16, #tpu.memory_space<vmem>>, %arg5: memref<32x8xbf16, #tpu.memory_space<vmem>>, %arg6: memref<8x96xbf16, #tpu.memory_space<vmem>>, %arg7: memref<16x96xbf16, #tpu.memory_space<vmem>>, %arg8: memref<16x96xf32, #tpu.memory_space<vmem>>, %arg9: memref<16x8xf32, #tpu.memory_space<vmem>>) attributes {dimension_semantics = [#tpu.dimension_semantics<parallel>, #tpu.dimension_semantics<parallel>, #tpu.dimension_semantics<arbitrary>], iteration_bounds = array<i64: 1, 1, 1>, scalar_prefetch = 0 : i64, scratch_operands = 2 : i64, tpu.core_type = #tpu.core_type<tc>, window_params = [{transform_indices = @transform_0, window_bounds = array<i64: 16, 32>}, {transform_indices = @transform_1, window_bounds = array<i64: 32, 96>}, {transform_indices = @transform_2, window_bounds = array<i64: 32, 8>}, {transform_indices = @transform_3, window_bounds = array<i64: 8, 96>}, {transform_indices = @transform_4, window_bounds = array<i64: 16, 96>}]} {
    %c0_i32 = arith.constant 0 : i32
    %0 = arith.cmpi eq, %arg2, %c0_i32 : i32
    %1 = arith.extui %0 : i1 to i32
    %c0_i32_0 = arith.constant 0 : i32
    %2 = arith.cmpi ne, %1, %c0_i32_0 : i32
    scf.if %2 {
      %cst_17 = arith.constant 0.000000e+00 : f32
      %17 = vector.broadcast %cst_17 : f32 to vector<16x96xf32>
      %c0_18 = arith.constant 0 : index
      %c0_19 = arith.constant 0 : index
      %18 = vector.load %arg8[%c0_18, %c0_19] : memref<16x96xf32, #tpu.memory_space<vmem>>, vector<16x96xf32>
      tpu.vector_store %arg8[%c0_18, %c0_19], %17 {strides = array<i32>} : memref<16x96xf32, #tpu.memory_space<vmem>>, vector<16x96xf32>,
      %cst_20 = arith.constant 0.000000e+00 : f32
      %19 = vector.broadcast %cst_20 : f32 to vector<16x8xf32>
      %c0_21 = arith.constant 0 : index
      %c0_22 = arith.constant 0 : index
      %20 = vector.load %arg9[%c0_21, %c0_22] : memref<16x8xf32, #tpu.memory_space<vmem>>, vector<16x8xf32>
      tpu.vector_store %arg9[%c0_21, %c0_22], %19 {strides = array<i32>} : memref<16x8xf32, #tpu.memory_space<vmem>>, vector<16x8xf32>,
    } else {
    }
    %c0 = arith.constant 0 : index
    %c0_1 = arith.constant 0 : index
    %3 = vector.load %arg3[%c0, %c0_1] : memref<16x32xbf16, #tpu.memory_space<vmem>>, vector<16x32xbf16>
    %c0_2 = arith.constant 0 : index
    %c0_3 = arith.constant 0 : index
    %4 = vector.load %arg8[%c0_2, %c0_3] : memref<16x96xf32, #tpu.memory_space<vmem>>, vector<16x96xf32>
    %c0_4 = arith.constant 0 : index
    %c0_5 = arith.constant 0 : index
    %5 = vector.load %arg4[%c0_4, %c0_5] : memref<32x96xbf16, #tpu.memory_space<vmem>>, vector<32x96xbf16>
    %cst = arith.constant dense<0.000000e+00> : vector<16x96xf32>
    %6 = tpu.matmul %3, %5, %cst {dimension_numbers = #tpu.dot_dimension_numbers<[1], [0], [0], [1], [0, 0, 1, 1], [], []>} : vector<16x32xbf16>, vector<32x96xbf16>, vector<16x96xf32> -> vector<16x96xf32>
    %7 = arith.addf %4, %6 : vector<16x96xf32>
    %c0_6 = arith.constant 0 : index
    %c0_7 = arith.constant 0 : index
    %8 = vector.load %arg8[%c0_6, %c0_7] : memref<16x96xf32, #tpu.memory_space<vmem>>, vector<16x96xf32>
    tpu.vector_store %arg8[%c0_6, %c0_7], %7 {strides = array<i32>} : memref<16x96xf32, #tpu.memory_space<vmem>>, vector<16x96xf32>,
    %c0_8 = arith.constant 0 : index
    %c0_9 = arith.constant 0 : index
    %9 = vector.load %arg9[%c0_8, %c0_9] : memref<16x8xf32, #tpu.memory_space<vmem>>, vector<16x8xf32>
    %c0_10 = arith.constant 0 : index
    %c0_11 = arith.constant 0 : index
    %10 = vector.load %arg5[%c0_10, %c0_11] : memref<32x8xbf16, #tpu.memory_space<vmem>>, vector<32x8xbf16>
    %cst_12 = arith.constant dense<0.000000e+00> : vector<16x8xf32>
    %11 = tpu.matmul %3, %10, %cst_12 {dimension_numbers = #tpu.dot_dimension_numbers<[1], [0], [0], [1], [0, 0, 1, 1], [], []>} : vector<16x32xbf16>, vector<32x8xbf16>, vector<16x8xf32> -> vector<16x8xf32>
    %12 = arith.addf %9, %11 : vector<16x8xf32>
    %c0_13 = arith.constant 0 : index
    %c0_14 = arith.constant 0 : index
    %13 = vector.load %arg9[%c0_13, %c0_14] : memref<16x8xf32, #tpu.memory_space<vmem>>, vector<16x8xf32>
    tpu.vector_store %arg9[%c0_13, %c0_14], %12 {strides = array<i32>} : memref<16x8xf32, #tpu.memory_space<vmem>>, vector<16x8xf32>,
    %c0_i32_15 = arith.constant 0 : i32
    %14 = arith.cmpi eq, %arg2, %c0_i32_15 : i32
    %15 = arith.extui %14 : i1 to i32
    %c0_i32_16 = arith.constant 0 : i32
    %16 = arith.cmpi ne, %15, %c0_i32_16 : i32
    scf.if %16 {
      %c0_17 = arith.constant 0 : index
      %c0_18 = arith.constant 0 : index
      %17 = vector.load %arg8[%c0_17, %c0_18] : memref<16x96xf32, #tpu.memory_space<vmem>>, vector<16x96xf32>
      %c0_19 = arith.constant 0 : index
      %c0_20 = arith.constant 0 : index
      %18 = vector.load %arg9[%c0_19, %c0_20] : memref<16x8xf32, #tpu.memory_space<vmem>>, vector<16x8xf32>
      %19 = arith.truncf %18 : vector<16x8xf32> to vector<16x8xbf16>
      %c0_21 = arith.constant 0 : index
      %c0_22 = arith.constant 0 : index
      %20 = vector.load %arg6[%c0_21, %c0_22] : memref<8x96xbf16, #tpu.memory_space<vmem>>, vector<8x96xbf16>
      %cst_23 = arith.constant dense<0.000000e+00> : vector<16x96xf32>
      %21 = tpu.matmul %19, %20, %cst_23 {dimension_numbers = #tpu.dot_dimension_numbers<[1], [0], [0], [1], [0, 0, 1, 1], [], []>} : vector<16x8xbf16>, vector<8x96xbf16>, vector<16x96xf32> -> vector<16x96xf32>
      %22 = arith.addf %17, %21 : vector<16x96xf32>
      %23 = arith.truncf %22 : vector<16x96xf32> to vector<16x96xbf16>
      %c0_24 = arith.constant 0 : index
      %c0_25 = arith.constant 0 : index
      %24 = vector.load %arg7[%c0_24, %c0_25] : memref<16x96xbf16, #tpu.memory_space<vmem>>, vector<16x96xbf16>
      tpu.vector_store %arg7[%c0_24, %c0_25], %23 {strides = array<i32>} : memref<16x96xbf16, #tpu.memory_space<vmem>>, vector<16x96xbf16>,
    } else {
    }
    return
  }
  func.func @transform_0(%arg0: i32, %arg1: i32, %arg2: i32) -> (i32, i32) {
    %c0_i32 = arith.constant 0 : i32
    return %arg0, %arg2 : i32, i32
  }
  func.func @transform_1(%arg0: i32, %arg1: i32, %arg2: i32) -> (i32, i32) {
    %c0_i32 = arith.constant 0 : i32
    return %arg2, %arg1 : i32, i32
  }
  func.func @transform_2(%arg0: i32, %arg1: i32, %arg2: i32) -> (i32, i32) {
    %c0_i32 = arith.constant 0 : i32
    %c0_i32_0 = arith.constant 0 : i32
    return %arg2, %c0_i32 : i32, i32
  }
  func.func @transform_3(%arg0: i32, %arg1: i32, %arg2: i32) -> (i32, i32) {
    %c0_i32 = arith.constant 0 : i32
    %c0_i32_0 = arith.constant 0 : i32
    return %c0_i32, %arg1 : i32, i32
  }
  func.func @transform_4(%arg0: i32, %arg1: i32, %arg2: i32) -> (i32, i32) {
    %c0_i32 = arith.constant 0 : i32
    return %arg0, %arg1 : i32, i32
  }
}

module attributes {stable_mosaic.version = 11 : i64} {
  func.func @_flash_attention_kernel(%arg0: i32, %arg1: i32, %arg2: i32, %arg3: i32, %arg4: memref<1x1x8x4xbf16, #tpu.memory_space<vmem>>, %arg5: memref<1x1x8x4xbf16, #tpu.memory_space<vmem>>, %arg6: memref<1x1x8x4xbf16, #tpu.memory_space<vmem>>, %arg7: memref<1x1x8x4xbf16, #tpu.memory_space<vmem>>, %arg8: memref<8x1xf32, #tpu.memory_space<vmem>>, %arg9: memref<8x1xf32, #tpu.memory_space<vmem>>, %arg10: memref<8x4xf32, #tpu.memory_space<vmem>>) attributes {dimension_semantics = [#tpu.dimension_semantics<parallel>, #tpu.dimension_semantics<parallel>, #tpu.dimension_semantics<parallel>, #tpu.dimension_semantics<arbitrary>], iteration_bounds = array<i64: 2, 8, 1, 1>, scalar_prefetch = 0 : i64, scratch_operands = 3 : i64, tpu.core_type = #tpu.core_type<tc>, window_params = [{transform_indices = @transform_0, window_bounds = array<i64: 1, 1, 8, 4>}, {transform_indices = @transform_1, window_bounds = array<i64: 1, 1, 8, 4>}, {transform_indices = @transform_2, window_bounds = array<i64: 1, 1, 8, 4>}, {transform_indices = @transform_3, window_bounds = array<i64: 1, 1, 8, 4>}]} {
    %c0_i32 = arith.constant 0 : i32
    %0 = arith.cmpi eq, %arg3, %c0_i32 : i32
    %1 = arith.extui %0 : i1 to i32
    %c0_i32_0 = arith.constant 0 : i32
    %2 = arith.cmpi ne, %1, %c0_i32_0 : i32
    scf.if %2 {
      %cst_30 = arith.constant 0xFF800000 : f32
      %38 = vector.broadcast %cst_30 : f32 to vector<8x1xf32>
      %c0_31 = arith.constant 0 : index
      %c0_32 = arith.constant 0 : index
      %39 = vector.load %arg8[%c0_31, %c0_32] : memref<8x1xf32, #tpu.memory_space<vmem>>, vector<8x1xf32>
      tpu.vector_store %arg8[%c0_31, %c0_32], %38 {strides = array<i32>} : memref<8x1xf32, #tpu.memory_space<vmem>>, vector<8x1xf32>,
      %cst_33 = arith.constant 0.000000e+00 : f32
      %40 = vector.broadcast %cst_33 : f32 to vector<8x1xf32>
      %c0_34 = arith.constant 0 : index
      %c0_35 = arith.constant 0 : index
      %41 = vector.load %arg9[%c0_34, %c0_35] : memref<8x1xf32, #tpu.memory_space<vmem>>, vector<8x1xf32>
      tpu.vector_store %arg9[%c0_34, %c0_35], %40 {strides = array<i32>} : memref<8x1xf32, #tpu.memory_space<vmem>>, vector<8x1xf32>,
      %cst_36 = arith.constant 0.000000e+00 : f32
      %42 = vector.broadcast %cst_36 : f32 to vector<8x4xf32>
      %c0_37 = arith.constant 0 : index
      %c0_38 = arith.constant 0 : index
      %43 = vector.load %arg10[%c0_37, %c0_38] : memref<8x4xf32, #tpu.memory_space<vmem>>, vector<8x4xf32>
      tpu.vector_store %arg10[%c0_37, %c0_38], %42 {strides = array<i32>} : memref<8x4xf32, #tpu.memory_space<vmem>>, vector<8x4xf32>,
    } else {
    }
    %c0 = arith.constant 0 : index
    %c0_1 = arith.constant 0 : index
    %c0_2 = arith.constant 0 : index
    %c0_3 = arith.constant 0 : index
    %3 = vector.load %arg4[%c0, %c0_1, %c0_2, %c0_3] : memref<1x1x8x4xbf16, #tpu.memory_space<vmem>>, vector<1x1x8x4xbf16>
    %4 = vector.shape_cast %3 : vector<1x1x8x4xbf16> to vector<8x4xbf16>
    %c0_4 = arith.constant 0 : index
    %c0_5 = arith.constant 0 : index
    %c0_6 = arith.constant 0 : index
    %c0_7 = arith.constant 0 : index
    %5 = vector.load %arg5[%c0_4, %c0_5, %c0_6, %c0_7] : memref<1x1x8x4xbf16, #tpu.memory_space<vmem>>, vector<1x1x8x4xbf16>
    %6 = vector.shape_cast %5 : vector<1x1x8x4xbf16> to vector<8x4xbf16>
    %c0_8 = arith.constant 0 : index
    %c0_9 = arith.constant 0 : index
    %c0_10 = arith.constant 0 : index
    %c0_11 = arith.constant 0 : index
    %7 = vector.load %arg6[%c0_8, %c0_9, %c0_10, %c0_11] : memref<1x1x8x4xbf16, #tpu.memory_space<vmem>>, vector<1x1x8x4xbf16>
    %8 = vector.shape_cast %7 : vector<1x1x8x4xbf16> to vector<8x4xbf16>
    %cst = arith.constant dense<0.000000e+00> : vector<8x8xf32>
    %9 = tpu.matmul %4, %6, %cst {dimension_numbers = #tpu.dot_dimension_numbers<[1], [1], [0], [0], [0, 0, 1, 0], [], []>} : vector<8x4xbf16>, vector<8x4xbf16>, vector<8x8xf32> -> vector<8x8xf32>
    %cst_12 = arith.constant 5.000000e-01 : f32
    %10 = vector.broadcast %cst_12 : f32 to vector<8x8xf32>
    %11 = arith.mulf %9, %10 : vector<8x8xf32>
    %c0_13 = arith.constant 0 : index
    %c0_14 = arith.constant 0 : index
    %12 = vector.load %arg8[%c0_13, %c0_14] : memref<8x1xf32, #tpu.memory_space<vmem>>, vector<8x1xf32>
    %cst_15 = arith.constant dense<0xFF800000> : vector<8xf32>
    %13 = vector.multi_reduction <maximumf>, %11, %cst_15 [1] : vector<8x8xf32> to vector<8xf32>
    %14 = vector.shape_cast %13 : vector<8xf32> to vector<8x1xf32>
    %15 = arith.maximumf %12, %14 : vector<8x1xf32>
    %16 = arith.subf %12, %15 : vector<8x1xf32>
    %17 = math.exp %16 : vector<8x1xf32>
    %18 = vector.broadcast %15 : vector<8x1xf32> to vector<8x8xf32>
    %19 = arith.subf %11, %18 : vector<8x8xf32>
    %20 = math.exp %19 : vector<8x8xf32>
    %c0_16 = arith.constant 0 : index
    %c0_17 = arith.constant 0 : index
    %21 = vector.load %arg9[%c0_16, %c0_17] : memref<8x1xf32, #tpu.memory_space<vmem>>, vector<8x1xf32>
    %22 = arith.mulf %17, %21 : vector<8x1xf32>
    %cst_18 = arith.constant dense<0.000000e+00> : vector<8xf32>
    %23 = vector.multi_reduction <add>, %20, %cst_18 [1] : vector<8x8xf32> to vector<8xf32>
    %24 = vector.shape_cast %23 : vector<8xf32> to vector<8x1xf32>
    %25 = arith.addf %22, %24 : vector<8x1xf32>
    %c0_19 = arith.constant 0 : index
    %c0_20 = arith.constant 0 : index
    %26 = vector.load %arg9[%c0_19, %c0_20] : memref<8x1xf32, #tpu.memory_space<vmem>>, vector<8x1xf32>
    tpu.vector_store %arg9[%c0_19, %c0_20], %25 {strides = array<i32>} : memref<8x1xf32, #tpu.memory_space<vmem>>, vector<8x1xf32>,
    %c0_21 = arith.constant 0 : index
    %c0_22 = arith.constant 0 : index
    %27 = vector.load %arg10[%c0_21, %c0_22] : memref<8x4xf32, #tpu.memory_space<vmem>>, vector<8x4xf32>
    %28 = vector.broadcast %17 : vector<8x1xf32> to vector<8x4xf32>
    %29 = arith.mulf %28, %27 : vector<8x4xf32>
    %30 = arith.truncf %20 : vector<8x8xf32> to vector<8x8xbf16>
    %cst_23 = arith.constant dense<0.000000e+00> : vector<8x4xf32>
    %31 = tpu.matmul %30, %8, %cst_23 {dimension_numbers = #tpu.dot_dimension_numbers<[1], [0], [0], [1], [0, 0, 1, 1], [], []>} : vector<8x8xbf16>, vector<8x4xbf16>, vector<8x4xf32> -> vector<8x4xf32>
    %32 = arith.addf %29, %31 : vector<8x4xf32>
    %c0_24 = arith.constant 0 : index
    %c0_25 = arith.constant 0 : index
    %33 = vector.load %arg10[%c0_24, %c0_25] : memref<8x4xf32, #tpu.memory_space<vmem>>, vector<8x4xf32>
    tpu.vector_store %arg10[%c0_24, %c0_25], %32 {strides = array<i32>} : memref<8x4xf32, #tpu.memory_space<vmem>>, vector<8x4xf32>,
    %c0_26 = arith.constant 0 : index
    %c0_27 = arith.constant 0 : index
    %34 = vector.load %arg8[%c0_26, %c0_27] : memref<8x1xf32, #tpu.memory_space<vmem>>, vector<8x1xf32>
    tpu.vector_store %arg8[%c0_26, %c0_27], %15 {strides = array<i32>} : memref<8x1xf32, #tpu.memory_space<vmem>>, vector<8x1xf32>,
    %c0_i32_28 = arith.constant 0 : i32
    %35 = arith.cmpi eq, %arg3, %c0_i32_28 : i32
    %36 = arith.extui %35 : i1 to i32
    %c0_i32_29 = arith.constant 0 : i32
    %37 = arith.cmpi ne, %36, %c0_i32_29 : i32
    scf.if %37 {
      %c0_30 = arith.constant 0 : index
      %c0_31 = arith.constant 0 : index
      %38 = vector.load %arg9[%c0_30, %c0_31] : memref<8x1xf32, #tpu.memory_space<vmem>>, vector<8x1xf32>
      %39 = tpu.reciprocal %38 {approx = true} : vector<8x1xf32> -> vector<8x1xf32>
      %c0_32 = arith.constant 0 : index
      %c0_33 = arith.constant 0 : index
      %40 = vector.load %arg10[%c0_32, %c0_33] : memref<8x4xf32, #tpu.memory_space<vmem>>, vector<8x4xf32>
      %41 = vector.broadcast %39 : vector<8x1xf32> to vector<8x4xf32>
      %42 = arith.mulf %40, %41 : vector<8x4xf32>
      %43 = arith.truncf %42 : vector<8x4xf32> to vector<8x4xbf16>
      %c0_34 = arith.constant 0 : index
      %c0_35 = arith.constant 0 : index
      %c0_36 = arith.constant 0 : index
      %c0_37 = arith.constant 0 : index
      %44 = vector.load %arg7[%c0_34, %c0_35, %c0_36, %c0_37] : memref<1x1x8x4xbf16, #tpu.memory_space<vmem>>, vector<1x1x8x4xbf16>
      %45 = vector.shape_cast %44 : vector<1x1x8x4xbf16> to vector<8x4xbf16>
      %46 = vector.shape_cast %43 : vector<8x4xbf16> to vector<1x1x8x4xbf16>
      tpu.vector_store %arg7[%c0_34, %c0_35, %c0_36, %c0_37], %46 {strides = array<i32>} : memref<1x1x8x4xbf16, #tpu.memory_space<vmem>>, vector<1x1x8x4xbf16>,
    } else {
    }
    return
  }
  func.func @transform_0(%arg0: i32, %arg1: i32, %arg2: i32, %arg3: i32) -> (i32, i32, i32, i32) {
    %c0_i32 = arith.constant 0 : i32
    %c0_i32_0 = arith.constant 0 : i32
    return %arg0, %arg1, %arg2, %c0_i32 : i32, i32, i32, i32
  }
  func.func @transform_1(%arg0: i32, %arg1: i32, %arg2: i32, %arg3: i32) -> (i32, i32, i32, i32) {
    %c0_i32 = arith.constant 0 : i32
    %c0_i32_0 = arith.constant 0 : i32
    return %arg0, %arg1, %arg3, %c0_i32 : i32, i32, i32, i32
  }
  func.func @transform_2(%arg0: i32, %arg1: i32, %arg2: i32, %arg3: i32) -> (i32, i32, i32, i32) {
    %c0_i32 = arith.constant 0 : i32
    %c0_i32_0 = arith.constant 0 : i32
    return %arg0, %arg1, %arg3, %c0_i32 : i32, i32, i32, i32
  }
  func.func @transform_3(%arg0: i32, %arg1: i32, %arg2: i32, %arg3: i32) -> (i32, i32, i32, i32) {
    %c0_i32 = arith.constant 0 : i32
    %c0_i32_0 = arith.constant 0 : i32
    return %arg0, %arg1, %arg2, %c0_i32 : i32, i32, i32, i32
  }
}

module attributes {stable_mosaic.version = 11 : i64} {
  func.func @_lora_linear_kernel(%arg0: i32, %arg1: i32, %arg2: i32, %arg3: memref<16x32xbf16, #tpu.memory_space<vmem>>, %arg4: memref<32x32xbf16, #tpu.memory_space<vmem>>, %arg5: memref<32x8xbf16, #tpu.memory_space<vmem>>, %arg6: memref<8x32xbf16, #tpu.memory_space<vmem>>, %arg7: memref<1x32xf32, #tpu.memory_space<vmem>>, %arg8: memref<16x32xf32, #tpu.memory_space<vmem>>, %arg9: memref<16x32xf32, #tpu.memory_space<vmem>>, %arg10: memref<16x8xf32, #tpu.memory_space<vmem>>) attributes {dimension_semantics = [#tpu.dimension_semantics<parallel>, #tpu.dimension_semantics<parallel>, #tpu.dimension_semantics<arbitrary>], iteration_bounds = array<i64: 1, 1, 1>, scalar_prefetch = 0 : i64, scratch_operands = 2 : i64, tpu.core_type = #tpu.core_type<tc>, window_params = [{transform_indices = @transform_0, window_bounds = array<i64: 16, 32>}, {transform_indices = @transform_1, window_bounds = array<i64: 32, 32>}, {transform_indices = @transform_2, window_bounds = array<i64: 32, 8>}, {transform_indices = @transform_3, window_bounds = array<i64: 8, 32>}, {transform_indices = @transform_4, window_bounds = array<i64: 1, 32>}, {transform_indices = @transform_5, window_bounds = array<i64: 16, 32>}]} {
    %c0_i32 = arith.constant 0 : i32
    %0 = arith.cmpi eq, %arg2, %c0_i32 : i32
    %1 = arith.extui %0 : i1 to i32
    %c0_i32_0 = arith.constant 0 : i32
    %2 = arith.cmpi ne, %1, %c0_i32_0 : i32
    scf.if %2 {
      %cst_17 = arith.constant 0.000000e+00 : f32
      %17 = vector.broadcast %cst_17 : f32 to vector<16x32xf32>
      %c0_18 = arith.constant 0 : index
      %c0_19 = arith.constant 0 : index
      %18 = vector.load %arg9[%c0_18, %c0_19] : memref<16x32xf32, #tpu.memory_space<vmem>>, vector<16x32xf32>
      tpu.vector_store %arg9[%c0_18, %c0_19], %17 {strides = array<i32>} : memref<16x32xf32, #tpu.memory_space<vmem>>, vector<16x32xf32>,
      %cst_20 = arith.constant 0.000000e+00 : f32
      %19 = vector.broadcast %cst_20 : f32 to vector<16x8xf32>
      %c0_21 = arith.constant 0 : index
      %c0_22 = arith.constant 0 : index
      %20 = vector.load %arg10[%c0_21, %c0_22] : memref<16x8xf32, #tpu.memory_space<vmem>>, vector<16x8xf32>
      tpu.vector_store %arg10[%c0_21, %c0_22], %19 {strides = array<i32>} : memref<16x8xf32, #tpu.memory_space<vmem>>, vector<16x8xf32>,
    } else {
    }
    %c0 = arith.constant 0 : index
    %c0_1 = arith.constant 0 : index
    %3 = vector.load %arg3[%c0, %c0_1] : memref<16x32xbf16, #tpu.memory_space<vmem>>, vector<16x32xbf16>
    %c0_2 = arith.constant 0 : index
    %c0_3 = arith.constant 0 : index
    %4 = vector.load %arg9[%c0_2, %c0_3] : memref<16x32xf32, #tpu.memory_space<vmem>>, vector<16x32xf32>
    %c0_4 = arith.constant 0 : index
    %c0_5 = arith.constant 0 : index
    %5 = vector.load %arg4[%c0_4, %c0_5] : memref<32x32xbf16, #tpu.memory_space<vmem>>, vector<32x32xbf16>
    %cst = arith.constant dense<0.000000e+00> : vector<16x32xf32>
    %6 = tpu.matmul %3, %5, %cst {dimension_numbers = #tpu.dot_dimension_numbers<[1], [0], [0], [1], [0, 0, 1, 1], [], []>} : vector<16x32xbf16>, vector<32x32xbf16>, vector<16x32xf32> -> vector<16x32xf32>
    %7 = arith.addf %4, %6 : vector<16x32xf32>
    %c0_6 = arith.constant 0 : index
    %c0_7 = arith.constant 0 : index
    %8 = vector.load %arg9[%c0_6, %c0_7] : memref<16x32xf32, #tpu.memory_space<vmem>>, vector<16x32xf32>
    tpu.vector_store %arg9[%c0_6, %c0_7], %7 {strides = array<i32>} : memref<16x32xf32, #tpu.memory_space<vmem>>, vector<16x32xf32>,
    %c0_8 = arith.constant 0 : index
    %c0_9 = arith.constant 0 : index
    %9 = vector.load %arg10[%c0_8, %c0_9] : memref<16x8xf32, #tpu.memory_space<vmem>>, vector<16x8xf32>
    %c0_10 = arith.constant 0 : index
    %c0_11 = arith.constant 0 : index
    %10 = vector.load %arg5[%c0_10, %c0_11] : memref<32x8xbf16, #tpu.memory_space<vmem>>, vector<32x8xbf16>
    %cst_12 = arith.constant dense<0.000000e+00> : vector<16x8xf32>
    %11 = tpu.matmul %3, %10, %cst_12 {dimension_numbers = #tpu.dot_dimension_numbers<[1], [0], [0], [1], [0, 0, 1, 1], [], []>} : vector<16x32xbf16>, vector<32x8xbf16>, vector<16x8xf32> -> vector<16x8xf32>
    %12 = arith.addf %9, %11 : vector<16x8xf32>
    %c0_13 = arith.constant 0 : index
    %c0_14 = arith.constant 0 : index
    %13 = vector.load %arg10[%c0_13, %c0_14] : memref<16x8xf32, #tpu.memory_space<vmem>>, vector<16x8xf32>
    tpu.vector_store %arg10[%c0_13, %c0_14], %12 {strides = array<i32>} : memref<16x8xf32, #tpu.memory_space<vmem>>, vector<16x8xf32>,
    %c0_i32_15 = arith.constant 0 : i32
    %14 = arith.cmpi eq, %arg2, %c0_i32_15 : i32
    %15 = arith.extui %14 : i1 to i32
    %c0_i32_16 = arith.constant 0 : i32
    %16 = arith.cmpi ne, %15, %c0_i32_16 : i32
    scf.if %16 {
      %c0_17 = arith.constant 0 : index
      %c0_18 = arith.constant 0 : index
      %17 = vector.load %arg9[%c0_17, %c0_18] : memref<16x32xf32, #tpu.memory_space<vmem>>, vector<16x32xf32>
      %c0_19 = arith.constant 0 : index
      %c0_20 = arith.constant 0 : index
      %18 = vector.load %arg10[%c0_19, %c0_20] : memref<16x8xf32, #tpu.memory_space<vmem>>, vector<16x8xf32>
      %19 = arith.truncf %18 : vector<16x8xf32> to vector<16x8xbf16>
      %c0_21 = arith.constant 0 : index
      %c0_22 = arith.constant 0 : index
      %20 = vector.load %arg6[%c0_21, %c0_22] : memref<8x32xbf16, #tpu.memory_space<vmem>>, vector<8x32xbf16>
      %cst_23 = arith.constant dense<0.000000e+00> : vector<16x32xf32>
      %21 = tpu.matmul %19, %20, %cst_23 {dimension_numbers = #tpu.dot_dimension_numbers<[1], [0], [0], [1], [0, 0, 1, 1], [], []>} : vector<16x8xbf16>, vector<8x32xbf16>, vector<16x32xf32> -> vector<16x32xf32>
      %22 = arith.addf %17, %21 : vector<16x32xf32>
      %c0_24 = arith.constant 0 : index
      %c0_25 = arith.constant 0 : index
      %23 = vector.load %arg7[%c0_24, %c0_25] : memref<1x32xf32, #tpu.memory_space<vmem>>, vector<1x32xf32>
      %24 = vector.broadcast %23 : vector<1x32xf32> to vector<16x32xf32>
      %25 = arith.addf %22, %24 : vector<16x32xf32>
      %c0_26 = arith.constant 0 : index
      %c0_27 = arith.constant 0 : index
      %26 = vector.load %arg8[%c0_26, %c0_27] : memref<16x32xf32, #tpu.memory_space<vmem>>, vector<16x32xf32>
      tpu.vector_store %arg8[%c0_26, %c0_27], %25 {strides = array<i32>} : memref<16x32xf32, #tpu.memory_space<vmem>>, vector<16x32xf32>,
    } else {
    }
    return
  }
  func.func @transform_0(%arg0: i32, %arg1: i32, %arg2: i32) -> (i32, i32) {
    %c0_i32 = arith.constant 0 : i32
    return %arg0, %arg2 : i32, i32
  }
  func.func @transform_1(%arg0: i32, %arg1: i32, %arg2: i32) -> (i32, i32) {
    %c0_i32 = arith.constant 0 : i32
    return %arg2, %arg1 : i32, i32
  }
  func.func @transform_2(%arg0: i32, %arg1: i32, %arg2: i32) -> (i32, i32) {
    %c0_i32 = arith.constant 0 : i32
    %c0_i32_0 = arith.constant 0 : i32
    return %arg2, %c0_i32 : i32, i32
  }
  func.func @transform_3(%arg0: i32, %arg1: i32, %arg2: i32) -> (i32, i32) {
    %c0_i32 = arith.constant 0 : i32
    %c0_i32_0 = arith.constant 0 : i32
    return %c0_i32, %arg1 : i32, i32
  }
  func.func @transform_4(%arg0: i32, %arg1: i32, %arg2: i32) -> (i32, i32) {
    %c0_i32 = arith.constant 0 : i32
    %c0_i32_0 = arith.constant 0 : i32
    return %c0_i32, %arg1 : i32, i32
  }
  func.func @transform_5(%arg0: i32, %arg1: i32, %arg2: i32) -> (i32, i32) {
    %c0_i32 = arith.constant 0 : i32
    return %arg0, %arg1 : i32, i32
  }
}

</mosaic_0001>

<llo_original>
// kernel: lora_attention_forward.4
$region0: #{lora_attention_forward.4}
  #allocation0 [shape = 'u32[]', space=smem, size = 0x4, offset = 0x4, fixed_abs, tag = 'smem constant byte address 0x4 - core index']
  #allocation1 [shape = 'u32[144,128]{1,0:T(1,128)}', space=vmem, size = 0x12000, scoped, tag = 'internal scratch']
  #allocation2 [shape = 'f32[8,1]{1,0:T(8,128)}', space=vmem, size = 0x1000, scoped, tag = 'scratch operand']
  #allocation3 [shape = 'f32[8,1]{1,0:T(8,128)}', space=vmem, size = 0x1000, scoped, tag = 'scratch operand']
  #allocation4 [shape = 'f32[8,4]{1,0:T(8,128)}', space=vmem, size = 0x1000, scoped, tag = 'scratch operand']
  %s0 = inlined_call_operand.vmem [shape: bf16[2,8,8,4], index: 0, kind: input, shape index: {}]
  %s1 = inlined_call_operand.vmem [shape: bf16[2,8,8,4], index: 1, kind: input, shape index: {}]
  %s2 = inlined_call_operand.vmem [shape: bf16[2,8,8,4], index: 2, kind: input, shape index: {}]
  %s3 = inlined_call_operand.vmem [shape: bf16[2,8,8,4], index: 3, kind: output, shape index: {}]
  %s4 = sld [smem:[#allocation0]]
  $region53: #{lora_attention_forward.4} parent=0
    _
  %s6 = ssub.s32 1, %s4
  %s7 = scalar_select 0, %s6, %s4
  loop: start=0, step=1, limit=18
  $region2: #{lora_attention_forward.4} parent=0 // loop_pre_header
    _
  $region3: #{lora_attention_forward.4} parent=0 // loop_header
    %s9 = sphi 0, %s13
    %p10 = scmp.ge.s32.totalorder %s9, 18
    %s16 = sphi 0, %s42
    %s17 = sphi 0, %s38
    %s18 = sphi 0, %s34
    %s19 = sphi 0, %s30
    %s20 = sphi 0, %s16
    %s21 = sphi 0, %s17
    %s22 = sphi 0, %s18
    %s23 = sphi 0, %s19
    %s24 = sphi 0, %s20
    %s25 = sphi 0, %s21
    %s26 = sphi 0, %s22
    %s27 = sphi 0, %s23
    %s49 = sphi 0, %s51
    %s52 = sphi 0, %s49
    %s53 = sphi 0, %s52
    %s69 = sphi 0, %s53
    %s79 = sphi 0, %s81
    %s82 = sphi 0, %s79
    %s83 = sphi 0, %s82
    %s99 = sphi 0, %s83
    %s109 = sphi 0, %s111
    %s112 = sphi 0, %s109
    %s113 = sphi 0, %s112
    %s129 = sphi 0, %s113
    %s139 = sphi 0, %s141
    %s142 = sphi 0, %s139
    %s143 = sphi 0, %s142
    %s159 = sphi 0, %s143
  $region4: #{lora_attention_forward.4} parent=0 // loop_header_branch
    %12 = sbr.rel (%p10) target = $region8
  $region5: #{lora_attention_forward.4} parent=0 // loop_body
    %s14 = ssub.s32 %s9, 1
    %s15 = ssub.s32 %s9, 2
    %s28 = sadd.s32 1, %s19
    %p29 = scmp.ge.s32.totalorder %s28, 1
    %s30 = scalar_select %p29, 0, %s28
    %s31 = sadd.s32 1, %s18
    %s32 = scalar_select %p29, %s31, %s18
    %p33 = scmp.ge.s32.totalorder %s32, 1
    %s34 = scalar_select %p33, 0, %s32
    %s35 = sadd.s32 1, %s17
    %s36 = scalar_select %p33, %s35, %s17
    %p37 = scmp.ge.s32.totalorder %s36, 8
    %s38 = scalar_select %p37, 0, %s36
    %s39 = sadd.s32 1, %s16
    %s40 = scalar_select %p37, %s39, %s16
    %p41 = scmp.ge.s32.totalorder %s40, 2
    %s42 = scalar_select %p41, 0, %s40
    %s43 = ssub.s32 %s16, %s42
    %s44 = ssub.s32 %s17, %s38
    %s45 = sor.u32 %s43, %s44
    %s46 = ssub.s32 %s18, %s34
    %s47 = sor.u32 %s45, %s46
    %p48 = scmp.eq.s32.totalorder %s47, 0
    %s50 = sadd.s32 %s49, 1
    %s51 = scalar_select %p48, %s49, %s50
    %p54 = pneg %p48
    %p55 = scmp.eq.s32.totalorder %s9, 15
    %p56 = por %p54, %p55
    %p57 = scmp.ne.s32.totalorder %s49, %s52
    %p58 = scmp.eq.s32.totalorder %s9, 0
    %p59 = por %p57, %p58
    %p60 = scmp.ne.s32.totalorder %s49, %s52
    %p61 = scmp.eq.s32.totalorder %s14, 15
    %p62 = por %p60, %p61
    %p63 = scmp.ne.s32.totalorder %s52, %s53
    %p64 = scmp.eq.s32.totalorder %s14, 0
    %p65 = por %p63, %p64
    %p66 = scmp.ne.s32.totalorder %s52, %s53
    %p67 = scmp.eq.s32.totalorder %s15, 15
    %p68 = por %p66, %p67
    %p70 = scmp.ne.s32.totalorder %s53, %s69
    %p71 = scmp.eq.s32.totalorder %s15, 0
    %p72 = por %p70, %p71
    %s73 = ssub.s32 %s16, %s42
    %s74 = ssub.s32 %s17, %s38
    %s75 = sor.u32 %s73, %s74
    %s76 = ssub.s32 %s19, %s30
    %s77 = sor.u32 %s75, %s76
    %p78 = scmp.eq.s32.totalorder %s77, 0
    %s80 = sadd.s32 %s79, 1
    %s81 = scalar_select %p78, %s79, %s80
    %p84 = pneg %p78
    %p85 = scmp.eq.s32.totalorder %s9, 15
    %p86 = por %p84, %p85
    %p87 = scmp.ne.s32.totalorder %s79, %s82
    %p88 = scmp.eq.s32.totalorder %s9, 0
    %p89 = por %p87, %p88
    %p90 = scmp.ne.s32.totalorder %s79, %s82
    %p91 = scmp.eq.s32.totalorder %s14, 15
    %p92 = por %p90, %p91
    %p93 = scmp.ne.s32.totalorder %s82, %s83
    %p94 = scmp.eq.s32.totalorder %s14, 0
    %p95 = por %p93, %p94
    %p96 = scmp.ne.s32.totalorder %s82, %s83
    %p97 = scmp.eq.s32.totalorder %s15, 15
    %p98 = por %p96, %p97
    %p100 = scmp.ne.s32.totalorder %s83, %s99
    %p101 = scmp.eq.s32.totalorder %s15, 0
    %p102 = por %p100, %p101
    %s103 = ssub.s32 %s16, %s42
    %s104 = ssub.s32 %s17, %s38
    %s105 = sor.u32 %s103, %s104
    %s106 = ssub.s32 %s19, %s30
    %s107 = sor.u32 %s105, %s106
    %p108 = scmp.eq.s32.totalorder %s107, 0
    %s110 = sadd.s32 %s109, 1
    %s111 = scalar_select %p108, %s109, %s110
    %p114 = pneg %p108
    %p115 = scmp.eq.s32.totalorder %s9, 15
    %p116 = por %p114, %p115
    %p117 = scmp.ne.s32.totalorder %s109, %s112
    %p118 = scmp.eq.s32.totalorder %s9, 0
    %p119 = por %p117, %p118
    %p120 = scmp.ne.s32.totalorder %s109, %s112
    %p121 = scmp.eq.s32.totalorder %s14, 15
    %p122 = por %p120, %p121
    %p123 = scmp.ne.s32.totalorder %s112, %s113
    %p124 = scmp.eq.s32.totalorder %s14, 0
    %p125 = por %p123, %p124
    %p126 = scmp.ne.s32.totalorder %s112, %s113
    %p127 = scmp.eq.s32.totalorder %s15, 15
    %p128 = por %p126, %p127
    %p130 = scmp.ne.s32.totalorder %s113, %s129
    %p131 = scmp.eq.s32.totalorder %s15, 0
    %p132 = por %p130, %p131
    %s133 = ssub.s32 %s16, %s42
    %s134 = ssub.s32 %s17, %s38
    %s135 = sor.u32 %s133, %s134
    %s136 = ssub.s32 %s18, %s34
    %s137 = sor.u32 %s135, %s136
    %p138 = scmp.eq.s32.totalorder %s137, 0
    %s140 = sadd.s32 %s139, 1
    %s141 = scalar_select %p138, %s139, %s140
    %p144 = pneg %p138
    %p145 = scmp.eq.s32.totalorder %s9, 15
    %p146 = por %p144, %p145
    %p147 = scmp.ne.s32.totalorder %s139, %s142
    %p148 = scmp.eq.s32.totalorder %s9, 0
    %p149 = por %p147, %p148
    %p150 = scmp.ne.s32.totalorder %s139, %s142
    %p151 = scmp.eq.s32.totalorder %s14, 15
    %p152 = por %p150, %p151
    %p153 = scmp.ne.s32.totalorder %s142, %s143
    %p154 = scmp.eq.s32.totalorder %s14, 0
    %p155 = por %p153, %p154
    %p156 = scmp.ne.s32.totalorder %s142, %s143
    %p157 = scmp.eq.s32.totalorder %s15, 15
    %p158 = por %p156, %p157
    %p160 = scmp.ne.s32.totalorder %s143, %s159
    %p161 = scmp.eq.s32.totalorder %s15, 0
    %p162 = por %p160, %p161
    %p163 = scmp.le.s32.totalorder 1, %s9
    %p164 = scmp.lt.s32.totalorder %s9, 17
    %p165 = pnand %p163, %p164
    %p166 = pneg %p165
    // Predicated region
    $region9: #{lora_attention_forward.4} parent=5 // pred_check
      _
    $region10: #{lora_attention_forward.4} parent=5 // pred_check_branch
      %168 = sbr.rel (%p165) target = $region12
    $region11: #{lora_attention_forward.4} parent=5 // pred_region
      %s169 = ssub.s32 %s9, 1
    $region12: #{lora_attention_forward.4} parent=5 // pred_fallthru
      _
    %p170 = scmp.lt.s32.totalorder %s9, 16
    // Predicated region
    $region13: #{lora_attention_forward.4} parent=5 // pred_check
      %p171 = pneg %p170
    $region14: #{lora_attention_forward.4} parent=5 // pred_check_branch
      %173 = sbr.rel (%p171) target = $region16
    $region15: #{lora_attention_forward.4} parent=5 // pred_region
      // Predicated region
      $region17: #{lora_attention_forward.4} parent=15 // pred_check
        %p174 = pneg %p59
      $region18: #{lora_attention_forward.4} parent=15 // pred_check_branch
        %176 = sbr.rel (%p174) target = $region20
      $region19: #{lora_attention_forward.4} parent=15 // pred_region
        %p177 = scmp.lt.s32.totalorder %s16, 1
        %s178 = scalar_select %p177, %s16, 1
        %p179 = scmp.lt.s32.totalorder %s17, 7
        %s180 = scalar_select %p179, %s17, 7
        %p181 = scmp.lt.s32.totalorder %s18, 0
        %s182 = scalar_select %p181, %s18, 0
        %s183 = sadd.s32 %s182, %s180
        %s184 = smul.addr %s178, 8
        %s185 = sadd.s32 %s183, %s184
        %s186 = smul.addr %s185, 4
        %s187 = scalar_lea.vmem %s0, %s186
      $region20: #{lora_attention_forward.4} parent=15 // pred_fallthru
        _
      // Predicated region
      $region21: #{lora_attention_forward.4} parent=15 // pred_check
        %p188 = pneg %p89
      $region22: #{lora_attention_forward.4} parent=15 // pred_check_branch
        %190 = sbr.rel (%p188) target = $region24
      $region23: #{lora_attention_forward.4} parent=15 // pred_region
        %p191 = scmp.lt.s32.totalorder %s16, 1
        %s192 = scalar_select %p191, %s16, 1
        %p193 = scmp.lt.s32.totalorder %s17, 7
        %s194 = scalar_select %p193, %s17, 7
        %p195 = scmp.lt.s32.totalorder %s19, 0
        %s196 = scalar_select %p195, %s19, 0
        %s197 = sadd.s32 %s196, %s194
        %s198 = smul.addr %s192, 8
        %s199 = sadd.s32 %s197, %s198
        %s200 = smul.addr %s199, 4
        %s201 = scalar_lea.vmem %s1, %s200
      $region24: #{lora_attention_forward.4} parent=15 // pred_fallthru
        _
      // Predicated region
      $region25: #{lora_attention_forward.4} parent=15 // pred_check
        %p202 = pneg %p119
      $region26: #{lora_attention_forward.4} parent=15 // pred_check_branch
        %204 = sbr.rel (%p202) target = $region28
      $region27: #{lora_attention_forward.4} parent=15 // pred_region
        %p205 = scmp.lt.s32.totalorder %s16, 1
        %s206 = scalar_select %p205, %s16, 1
        %p207 = scmp.lt.s32.totalorder %s17, 7
        %s208 = scalar_select %p207, %s17, 7
        %p209 = scmp.lt.s32.totalorder %s19, 0
        %s210 = scalar_select %p209, %s19, 0
        %s211 = sadd.s32 %s210, %s208
        %s212 = smul.addr %s206, 8
        %s213 = sadd.s32 %s211, %s212
        %s214 = smul.addr %s213, 4
        %s215 = scalar_lea.vmem %s2, %s214
      $region28: #{lora_attention_forward.4} parent=15 // pred_fallthru
        _
    $region16: #{lora_attention_forward.4} parent=5 // pred_fallthru
      _
    %p216 = scmp.le.s32.totalorder 1, %s9
    %p217 = scmp.lt.s32.totalorder %s9, 17
    %p218 = pnand %p216, %p217
    %p219 = pneg %p218
    // Predicated region
    $region29: #{lora_attention_forward.4} parent=5 // pred_check
      _
    $region30: #{lora_attention_forward.4} parent=5 // pred_check_branch
      %221 = sbr.rel (%p218) target = $region32
    $region31: #{lora_attention_forward.4} parent=5 // pred_region
      %s222 = ssub.s32 %s9, 1
      %p223 = scmp.lt.s32.totalorder %s20, 1
      %s224 = scalar_select %p223, %s20, 1
      %p225 = scmp.lt.s32.totalorder %s21, 7
      %s226 = scalar_select %p225, %s21, 7
      %p227 = scmp.lt.s32.totalorder %s22, 0
      %s228 = scalar_select %p227, %s22, 0
      %s229 = sadd.s32 %s228, %s226
      %s230 = smul.addr %s224, 8
      %s231 = sadd.s32 %s229, %s230
      %s232 = smul.addr %s231, 4
      %s233 = scalar_lea.vmem %s0, %s232
      %p234 = pneg %p65
      %p235 = pneg %p62
      %p236 = scmp.lt.s32.totalorder %s20, 1
      %s237 = scalar_select %p236, %s20, 1
      %p238 = scmp.lt.s32.totalorder %s21, 7
      %s239 = scalar_select %p238, %s21, 7
      %p240 = scmp.lt.s32.totalorder %s23, 0
      %s241 = scalar_select %p240, %s23, 0
      %s242 = sadd.s32 %s241, %s239
      %s243 = smul.addr %s237, 8
      %s244 = sadd.s32 %s242, %s243
      %s245 = smul.addr %s244, 4
      %s246 = scalar_lea.vmem %s1, %s245
      %p247 = pneg %p95
      %p248 = pneg %p92
      %p249 = scmp.lt.s32.totalorder %s20, 1
      %s250 = scalar_select %p249, %s20, 1
      %p251 = scmp.lt.s32.totalorder %s21, 7
      %s252 = scalar_select %p251, %s21, 7
      %p253 = scmp.lt.s32.totalorder %s23, 0
      %s254 = scalar_select %p253, %s23, 0
      %s255 = sadd.s32 %s254, %s252
      %s256 = smul.addr %s250, 8
      %s257 = sadd.s32 %s255, %s256
      %s258 = smul.addr %s257, 4
      %s259 = scalar_lea.vmem %s2, %s258
      %p260 = pneg %p125
      %p261 = pneg %p122
      %p262 = pneg %p155
      %p263 = pneg %p152
      %p264 = scmp.lt.s32.totalorder %s20, 1
      %s265 = scalar_select %p264, %s20, 1
      %p266 = scmp.lt.s32.totalorder %s21, 7
      %s267 = scalar_select %p266, %s21, 7
      %p268 = scmp.lt.s32.totalorder %s22, 0
      %s269 = scalar_select %p268, %s22, 0
      %s270 = sadd.s32 %s269, %s267
      %s271 = smul.addr %s265, 8
      %s272 = sadd.s32 %s270, %s271
      %s273 = smul.addr %s272, 4
      %s274 = scalar_lea.vmem %s3, %s273
      %p275 = scmp.lt.s32.totalorder %s20, 1
      %s276 = scalar_select %p275, %s20, 1
      %p277 = scmp.lt.s32.totalorder %s21, 7
      %s278 = scalar_select %p277, %s21, 7
      %p279 = scmp.lt.s32.totalorder %s22, 0
      %s280 = scalar_select %p279, %s22, 0
      %s281 = sadd.s32 %s280, %s278
      %s282 = smul.addr %s276, 8
      %s283 = sadd.s32 %s281, %s282
      %s284 = smul.addr %s283, 4
      %s285 = scalar_lea.vmem %s0, %s284
      %p286 = scmp.lt.s32.totalorder %s20, 1
      %s287 = scalar_select %p286, %s20, 1
      %p288 = scmp.lt.s32.totalorder %s21, 7
      %s289 = scalar_select %p288, %s21, 7
      %p290 = scmp.lt.s32.totalorder %s23, 0
      %s291 = scalar_select %p290, %s23, 0
      %s292 = sadd.s32 %s291, %s289
      %s293 = smul.addr %s287, 8
      %s294 = sadd.s32 %s292, %s293
      %s295 = smul.addr %s294, 4
      %s296 = scalar_lea.vmem %s1, %s295
      %p297 = scmp.lt.s32.totalorder %s20, 1
      %s298 = scalar_select %p297, %s20, 1
      %p299 = scmp.lt.s32.totalorder %s21, 7
      %s300 = scalar_select %p299, %s21, 7
      %p301 = scmp.lt.s32.totalorder %s23, 0
      %s302 = scalar_select %p301, %s23, 0
      %s303 = sadd.s32 %s302, %s300
      %s304 = smul.addr %s298, 8
      %s305 = sadd.s32 %s303, %s304
      %s306 = smul.addr %s305, 4
      %s307 = scalar_lea.vmem %s2, %s306
      %p308 = scmp.lt.s32.totalorder %s20, 1
      %s309 = scalar_select %p308, %s20, 1
      %p310 = scmp.lt.s32.totalorder %s21, 7
      %s311 = scalar_select %p310, %s21, 7
      %p312 = scmp.lt.s32.totalorder %s22, 0
      %s313 = scalar_select %p312, %s22, 0
      %s314 = sadd.s32 %s313, %s311
      %s315 = smul.addr %s309, 8
      %s316 = sadd.s32 %s314, %s315
      %s317 = smul.addr %s316, 4
      %s318 = scalar_lea.vmem %s3, %s317
      %p320 = scmp.eq.s32.totalorder %s23, 0
      // Predicated region
      $region33: #{lora_attention_forward.4} parent=31 // pred_check
        %p321 = pneg %p320
      $region34: #{lora_attention_forward.4} parent=31 // pred_check_branch
        %323 = sbr.rel (%p321) target = $region36
      $region35: #{lora_attention_forward.4} parent=31 // pred_region
        %vm324 = vcmask 7168
        %325 = vst.msk [vmem:[#allocation2] sm:$0xff] %vm324, -inf
        %326 = vst.msk [vmem:[#allocation3] sm:$0xff] %vm324, 0.0
        %vm327 = vcmask 31744
        %328 = vst.msk [vmem:[#allocation4] sm:$0xff] %vm327, 0.0
      $region36: #{lora_attention_forward.4} parent=31 // pred_fallthru
        _
      %v329 = vld [vmem:[%s285] sm:$0xf]
      %v330 = vld [vmem:[%s296] sm:$0xf]
      %v331 = vld [vmem:[%s307] sm:$0xf]
      %vm332 = vcmask 31744
      %v334 = vsel %vm332, %v329, 0
      %v337 = vsel %vm332, %v330, 0
      %339 = vmatprep.subr.bf16.mxu0 0
      %340 = vmatpush1.bf16.xpose.msra.mxu0 0
      %341 = vmatprep.subr.bf16.mxu0 0
      %342 = vmatpush1.bf16.xpose.msra.mxu0 0
      %343 = vmatprep.subr.bf16.mxu0 0
      %344 = vmatpush1.bf16.xpose.msra.mxu0 0
      %345 = vmatprep.subr.bf16.mxu0 0
      %346 = vmatpush1.bf16.xpose.msra.mxu0 0
      %347 = vmatprep.subr.bf16.mxu0 0
      %348 = vmatpush1.bf16.xpose.msra.mxu0 0
      %349 = vmatprep.subr.bf16.mxu0 0
      %350 = vmatpush1.bf16.xpose.msra.mxu0 0
      %351 = vmatprep.subr.bf16.mxu0 0
      %352 = vmatpush1.bf16.xpose.msra.mxu0 0
      %353 = vmatprep.subr.bf16.mxu0 0
      %354 = vmatpush1.bf16.xpose.msra.mxu0 %v337
      %355 = vmatprep.subr.bf16.mxu0 0
      %356 = vmatpush2.bf16.xpose.msra.mxu0 0
      %357 = vmatprep.subr.bf16.mxu0 0
      %358 = vmatpush2.bf16.xpose.msra.mxu0 0
      %359 = vmatprep.subr.bf16.mxu0 0
      %360 = vmatpush2.bf16.xpose.msra.mxu0 0
      %361 = vmatprep.subr.bf16.mxu0 0
      %362 = vmatpush2.bf16.xpose.msra.mxu0 0
      %363 = vmatprep.subr.bf16.mxu0 0
      %364 = vmatpush2.bf16.xpose.msra.mxu0 0
      %365 = vmatprep.subr.bf16.mxu0 0
      %366 = vmatpush2.bf16.xpose.msra.mxu0 0
      %367 = vmatprep.subr.bf16.mxu0 0
      %368 = vmatpush2.bf16.xpose.msra.mxu0 0
      %369 = vmatprep.subr.bf16.mxu0 0
      %370 = vmatpush2.bf16.xpose.msra.mxu0 0
      %371 = vmatprep.mubr.bf16.mxu0 0
      %372 = vmatmul.mubr.bf16.gmra.mxu0 %v334
      %v373 = vpop.f32.mrf.mxu0
      %v374 = vadd.f32 0.0, %v373
      %v375 = vpop.f32.mrf.mxu0
      %v376 = vpop.f32.mrf.mxu0
      %v377 = vpop.f32.mrf.mxu0
      %378 = vdwg.mxu0
      %v379 = vmul.f32 %v374, 0.5
      %v380 = vld [vmem:[#allocation2] sm:$0xff]
      %vm381 = vcmask 64512
      %v382 = vsel %vm381, %v379, -inf
      %383 = vmax.xlane.f32.xlu0 %v382
      %v384 = vpop.xlane.xlu0 %383
      %v385 = vmax.f32 %v380, %v384
      %v386 = vsub.f32 %v380, %v385
      %v387 = vmul.f32 %v386, 1.442695
      %v388 = vpow.pop %v387
      %390 = vset.pattern.permute.xlu0 0
      %391 = vperm.xlu0 %390, %v385
      %v392 = vpop.permute.xlu0 %391
      %v394 = vsub.f32 %v379, %v392
      %v395 = vmul.f32 %v394, 1.442695
      %v396 = vpow.pop %v395
      %v397 = vld [vmem:[#allocation3] sm:$0xff]
      %v398 = vmul.f32 %v388, %v397
      %v399 = vsel %vm381, %v396, 0.0
      %400 = vadd.xlane.f32.xlu0 %v399
      %v401 = vpop.xlane.xlu0 %400
      %v402 = vadd.f32 %v398, %v401
      %vm403 = vcmask 7168
      %404 = vst.msk [vmem:[#allocation3] sm:$0xff] %vm403, %v402
      %v405 = vld [vmem:[#allocation4] sm:$0xff]
      %407 = vset.pattern.permute.xlu0 0
      %408 = vperm.xlu0 %407, %v388
      %v409 = vpop.permute.xlu0 %408
      %v411 = vmul.f32 %v409, %v405
      %v412 = vpack.c.bf16 %v396, %v396
      %v414 = vsel %vm381, %v412, 0
      %vm416 = vcmask 1043456
      %v418 = vsel %vm416, %v331, 0
      %420 = vmatprep.subr.bf16.mxu0 0
      %421 = vmatpush1.bf16.msra.mxu0 0
      %422 = vmatprep.subr.bf16.mxu0 0
      %423 = vmatpush1.bf16.msra.mxu0 0
      %424 = vmatprep.subr.bf16.mxu0 0
      %425 = vmatpush1.bf16.msra.mxu0 0
      %426 = vmatprep.subr.bf16.mxu0 0
      %427 = vmatpush1.bf16.msra.mxu0 0
      %428 = vmatprep.subr.bf16.mxu0 0
      %429 = vmatpush1.bf16.msra.mxu0 0
      %430 = vmatprep.subr.bf16.mxu0 0
      %431 = vmatpush1.bf16.msra.mxu0 0
      %432 = vmatprep.subr.bf16.mxu0 0
      %433 = vmatpush1.bf16.msra.mxu0 0
      %434 = vmatprep.subr.bf16.mxu0 0
      %435 = vmatpush1.bf16.msra.mxu0 %v418
      %436 = vmatprep.subr.bf16.mxu0 0
      %437 = vmatpush2.bf16.msra.mxu0 0
      %438 = vmatprep.subr.bf16.mxu0 0
      %439 = vmatpush2.bf16.msra.mxu0 0
      %440 = vmatprep.subr.bf16.mxu0 0
      %441 = vmatpush2.bf16.msra.mxu0 0
      %442 = vmatprep.subr.bf16.mxu0 0
      %443 = vmatpush2.bf16.msra.mxu0 0
      %444 = vmatprep.subr.bf16.mxu0 0
      %445 = vmatpush2.bf16.msra.mxu0 0
      %446 = vmatprep.subr.bf16.mxu0 0
      %447 = vmatpush2.bf16.msra.mxu0 0
      %448 = vmatprep.subr.bf16.mxu0 0
      %449 = vmatpush2.bf16.msra.mxu0 0
      %450 = vmatprep.subr.bf16.mxu0 0
      %451 = vmatpush2.bf16.msra.mxu0 0
      %452 = vmatprep.mubr.bf16.mxu0 0
      %453 = vmatmul.mubr.bf16.gmra.mxu0 %v414
      %v454 = vpop.f32.mrf.mxu0
      %v455 = vadd.f32 0.0, %v454
      %v456 = vpop.f32.mrf.mxu0
      %v457 = vpop.f32.mrf.mxu0
      %v458 = vpop.f32.mrf.mxu0
      %459 = vdwg.mxu0
      %v460 = vadd.f32 %v411, %v455
      %461 = vst.msk [vmem:[#allocation4] sm:$0xff] %vm332, %v460
      %462 = vst.msk [vmem:[#allocation2] sm:$0xff] %vm403, %v385
      // Predicated region
      $region37: #{lora_attention_forward.4} parent=31 // pred_check
        %p463 = pneg %p320
      $region38: #{lora_attention_forward.4} parent=31 // pred_check_branch
        %465 = sbr.rel (%p463) target = $region40
      $region39: #{lora_attention_forward.4} parent=31 // pred_region
        %v466 = vld [vmem:[#allocation3] sm:$0xff]
        %v467 = vrcp.pop %v466
        %v468 = vld [vmem:[#allocation4] sm:$0xff]
        %470 = vset.pattern.permute.xlu0 0
        %471 = vperm.xlu0 %470, %v467
        %v472 = vpop.permute.xlu0 %471
        %v474 = vmul.f32 %v468, %v472
        %v475 = vpack.c.bf16 %v474, %v474
        %vm476 = vcmask 27648
        %477 = vst.msk [vmem:[%s318] sm:$0xf] %vm476, %v475
      $region40: #{lora_attention_forward.4} parent=31 // pred_fallthru
        _
      %p478 = scmp.lt.s32.totalorder %s20, 1
      %s479 = scalar_select %p478, %s20, 1
      %p480 = scmp.lt.s32.totalorder %s21, 7
      %s481 = scalar_select %p480, %s21, 7
      %p482 = scmp.lt.s32.totalorder %s22, 0
      %s483 = scalar_select %p482, %s22, 0
      %s484 = sadd.s32 %s483, %s481
      %s485 = smul.addr %s479, 8
      %s486 = sadd.s32 %s484, %s485
      %s487 = smul.addr %s486, 4
      %s488 = scalar_lea.vmem %s3, %s487
      // Predicated region
      $region41: #{lora_attention_forward.4} parent=31 // pred_check
        %p489 = pneg %p152
      $region42: #{lora_attention_forward.4} parent=31 // pred_check_branch
        %491 = sbr.rel (%p489) target = $region44
      $region43: #{lora_attention_forward.4} parent=31 // pred_region
        _
      $region44: #{lora_attention_forward.4} parent=31 // pred_fallthru
        _
    $region32: #{lora_attention_forward.4} parent=5 // pred_fallthru
      _
    %p492 = scmp.le.s32.totalorder 2, %s9
    // Predicated region
    $region45: #{lora_attention_forward.4} parent=5 // pred_check
      %p493 = pneg %p492
    $region46: #{lora_attention_forward.4} parent=5 // pred_check_branch
      %495 = sbr.rel (%p493) target = $region48
    $region47: #{lora_attention_forward.4} parent=5 // pred_region
      %s496 = ssub.s32 %s9, 2
      // Predicated region
      $region49: #{lora_attention_forward.4} parent=47 // pred_check
        %p497 = pneg %p158
      $region50: #{lora_attention_forward.4} parent=47 // pred_check_branch
        %499 = sbr.rel (%p497) target = $region52
      $region51: #{lora_attention_forward.4} parent=47 // pred_region
        %p500 = scmp.lt.s32.totalorder %s24, 1
        %s501 = scalar_select %p500, %s24, 1
        %p502 = scmp.lt.s32.totalorder %s25, 7
        %s503 = scalar_select %p502, %s25, 7
        %p504 = scmp.lt.s32.totalorder %s26, 0
        %s505 = scalar_select %p504, %s26, 0
        %s506 = sadd.s32 %s505, %s503
        %s507 = smul.addr %s501, 8
        %s508 = sadd.s32 %s506, %s507
        %s509 = smul.addr %s508, 4
        %s510 = scalar_lea.vmem %s3, %s509
      $region52: #{lora_attention_forward.4} parent=47 // pred_fallthru
        _
    $region48: #{lora_attention_forward.4} parent=5 // pred_fallthru
      _
  $region6: #{lora_attention_forward.4} parent=0 // loop_footer
    %s13 = sadd.s32 1, %s9
  $region7: #{lora_attention_forward.4} parent=0 // loop_footer_branch
    %8 = sbr.rel target = $region3
  $region8: #{lora_attention_forward.4} parent=0 // loop_exit
    _

// kernel: lora_attention_forward.3
$region0: #{lora_attention_forward.3}
  #allocation0 [shape = 'u32[]', space=smem, size = 0x4, offset = 0x4, fixed_abs, tag = 'smem constant byte address 0x4 - core index']
  #allocation1 [shape = 'u32[144,128]{1,0:T(1,128)}', space=vmem, size = 0x12000, scoped, tag = 'internal scratch']
  #allocation2 [shape = 'f32[16,96]{1,0:T(8,128)}', space=vmem, size = 0x2000, scoped, tag = 'scratch operand']
  #allocation3 [shape = 'f32[16,8]{1,0:T(8,128)}', space=vmem, size = 0x2000, scoped, tag = 'scratch operand']
  %s0 = inlined_call_operand.vmem [shape: bf16[16,32], index: 0, kind: input, shape index: {}]
  %s1 = inlined_call_operand.vmem [shape: bf16[32,96], index: 1, kind: input, shape index: {}]
  %s2 = inlined_call_operand.vmem [shape: bf16[32,8], index: 2, kind: input, shape index: {}]
  %s3 = inlined_call_operand.vmem [shape: bf16[8,96], index: 3, kind: input, shape index: {}]
  %s4 = inlined_call_operand.vmem [shape: bf16[16,96], index: 4, kind: output, shape index: {}]
  %s5 = sld [smem:[#allocation0]]
  $region34: #{lora_attention_forward.3} parent=0
    _
  %s7 = ssub.s32 1, %s5
  %s8 = scalar_select 0, %s7, %s5
  // Predicated region
  $region2: #{lora_attention_forward.3} parent=0 // pred_check
    _
  $region3: #{lora_attention_forward.3} parent=0 // pred_check_branch
    %10 = sbr.rel (0) target = $region5
  $region4: #{lora_attention_forward.3} parent=0 // pred_region
    _
  $region5: #{lora_attention_forward.3} parent=0 // pred_fallthru
    _
  // Predicated region
  $region6: #{lora_attention_forward.3} parent=0 // pred_check
    _
  $region7: #{lora_attention_forward.3} parent=0 // pred_check_branch
    %12 = sbr.rel (0) target = $region9
  $region8: #{lora_attention_forward.3} parent=0 // pred_region
    _
  $region9: #{lora_attention_forward.3} parent=0 // pred_fallthru
    _
  // Predicated region
  $region10: #{lora_attention_forward.3} parent=0 // pred_check
    _
  $region11: #{lora_attention_forward.3} parent=0 // pred_check_branch
    %14 = sbr.rel (0) target = $region13
  $region12: #{lora_attention_forward.3} parent=0 // pred_region
    _
  $region13: #{lora_attention_forward.3} parent=0 // pred_fallthru
    _
  // Predicated region
  $region14: #{lora_attention_forward.3} parent=0 // pred_check
    _
  $region15: #{lora_attention_forward.3} parent=0 // pred_check_branch
    %16 = sbr.rel (0) target = $region17
  $region16: #{lora_attention_forward.3} parent=0 // pred_region
    _
  $region17: #{lora_attention_forward.3} parent=0 // pred_fallthru
    _
  %p18 = scmp.eq.s32.totalorder 0, 0
  // Predicated region
  $region18: #{lora_attention_forward.3} parent=0 // pred_check
    %p19 = pneg %p18
  $region19: #{lora_attention_forward.3} parent=0 // pred_check_branch
    %21 = sbr.rel (%p19) target = $region21
  $region20: #{lora_attention_forward.3} parent=0 // pred_region
    %vm22 = vcmask 785408
    %23 = vst.msk [vmem:[#allocation2] sm:$0xff] %vm22, 0.0
    %24 = vst.msk [vmem:[#allocation2 + $0x8] sm:$0xff] %vm22, 0.0
    %vm25 = vcmask 64512
    %26 = vst.msk [vmem:[#allocation3] sm:$0xff] %vm25, 0.0
    %27 = vst.msk [vmem:[#allocation3 + $0x8] sm:$0xff] %vm25, 0.0
  $region21: #{lora_attention_forward.3} parent=0 // pred_fallthru
    _
  %v28 = vld [vmem:[%s0] sm:$0xf]
  %v29 = vld [vmem:[%s0 + $0x4] sm:$0xf]
  %v30 = vld [vmem:[#allocation2] sm:$0xff]
  %v31 = vld [vmem:[#allocation2 + $0x8] sm:$0xff]
  %v32 = vld [vmem:[%s1] sm:$0xf]
  %v33 = vld [vmem:[%s1 + $0x4] sm:$0xf]
  %v34 = vld [vmem:[%s1 + $0x8] sm:$0xf]
  %v35 = vld [vmem:[%s1 + $0xc] sm:$0xf]
  %v38 = vunpack.c.l.b16 %v28
  %v39 = vunpack.c.l.b16 %v29
  %v40 = vpack.c.b16 %v39, %v38
  %v45 = vunpack.c.l.b16 %v32
  %v46 = vunpack.c.l.b16 %v33
  %v47 = vunpack.c.l.b16 %v34
  %v48 = vunpack.c.l.b16 %v35
  %v49 = vpack.c.b16 %v46, %v45
  %v50 = vpack.c.b16 %v48, %v47
  %vm53 = vcmask 261120
  %v55 = vsel %vm53, %v40, 0
  %57 = vmatprep.subr.bf16.mxu0 0
  %58 = vmatpush1.bf16.msra.mxu0 0
  %59 = vmatprep.subr.bf16.mxu0 0
  %60 = vmatpush1.bf16.msra.mxu0 0
  %61 = vmatprep.subr.bf16.mxu0 0
  %62 = vmatpush1.bf16.msra.mxu0 0
  %63 = vmatprep.subr.bf16.mxu0 0
  %64 = vmatpush1.bf16.msra.mxu0 0
  %65 = vmatprep.subr.bf16.mxu0 0
  %66 = vmatpush1.bf16.msra.mxu0 0
  %67 = vmatprep.subr.bf16.mxu0 0
  %68 = vmatpush1.bf16.msra.mxu0 0
  %69 = vmatprep.subr.bf16.mxu0 0
  %70 = vmatpush1.bf16.msra.mxu0 %v50
  %71 = vmatprep.subr.bf16.mxu0 0
  %72 = vmatpush1.bf16.msra.mxu0 %v49
  %73 = vmatprep.subr.bf16.mxu0 0
  %74 = vmatpush2.bf16.msra.mxu0 0
  %75 = vmatprep.subr.bf16.mxu0 0
  %76 = vmatpush2.bf16.msra.mxu0 0
  %77 = vmatprep.subr.bf16.mxu0 0
  %78 = vmatpush2.bf16.msra.mxu0 0
  %79 = vmatprep.subr.bf16.mxu0 0
  %80 = vmatpush2.bf16.msra.mxu0 0
  %81 = vmatprep.subr.bf16.mxu0 0
  %82 = vmatpush2.bf16.msra.mxu0 0
  %83 = vmatprep.subr.bf16.mxu0 0
  %84 = vmatpush2.bf16.msra.mxu0 0
  %85 = vmatprep.subr.bf16.mxu0 0
  %86 = vmatpush2.bf16.msra.mxu0 0
  %87 = vmatprep.subr.bf16.mxu0 0
  %88 = vmatpush2.bf16.msra.mxu0 0
  %89 = vmatprep.mubr.bf16.mxu0 0
  %90 = vmatmul.mubr.bf16.gmra.mxu0 %v55
  %v91 = vpop.f32.mrf.mxu0
  %v92 = vadd.f32 0.0, %v91
  %v93 = vpop.f32.mrf.mxu0
  %v94 = vpop.f32.mrf.mxu0
  %v95 = vadd.f32 0.0, %v94
  %v96 = vpop.f32.mrf.mxu0
  %97 = vdwg.mxu0
  %v98 = vadd.f32 %v30, %v92
  %v99 = vadd.f32 %v31, %v95
  %vm100 = vcmask 785408
  %101 = vst.msk [vmem:[#allocation2] sm:$0xff] %vm100, %v98
  %102 = vst.msk [vmem:[#allocation2 + $0x8] sm:$0xff] %vm100, %v99
  %v103 = vld [vmem:[#allocation3] sm:$0xff]
  %v104 = vld [vmem:[#allocation3 + $0x8] sm:$0xff]
  %v105 = vld [vmem:[%s2] sm:$0xf]
  %v106 = vld [vmem:[%s2 + $0x4] sm:$0xf]
  %v107 = vld [vmem:[%s2 + $0x8] sm:$0xf]
  %v108 = vld [vmem:[%s2 + $0xc] sm:$0xf]
  %v113 = vunpack.c.l.b16 %v105
  %v114 = vunpack.c.l.b16 %v106
  %v115 = vunpack.c.l.b16 %v107
  %v116 = vunpack.c.l.b16 %v108
  %v117 = vpack.c.b16 %v114, %v113
  %v118 = vpack.c.b16 %v116, %v115
  %121 = vmatprep.subr.bf16.mxu0 0
  %122 = vmatpush1.bf16.msra.mxu0 0
  %123 = vmatprep.subr.bf16.mxu0 0
  %124 = vmatpush1.bf16.msra.mxu0 0
  %125 = vmatprep.subr.bf16.mxu0 0
  %126 = vmatpush1.bf16.msra.mxu0 0
  %127 = vmatprep.subr.bf16.mxu0 0
  %128 = vmatpush1.bf16.msra.mxu0 0
  %129 = vmatprep.subr.bf16.mxu0 0
  %130 = vmatpush1.bf16.msra.mxu0 0
  %131 = vmatprep.subr.bf16.mxu0 0
  %132 = vmatpush1.bf16.msra.mxu0 0
  %133 = vmatprep.subr.bf16.mxu0 0
  %134 = vmatpush1.bf16.msra.mxu0 %v118
  %135 = vmatprep.subr.bf16.mxu0 0
  %136 = vmatpush1.bf16.msra.mxu0 %v117
  %137 = vmatprep.subr.bf16.mxu0 0
  %138 = vmatpush2.bf16.msra.mxu0 0
  %139 = vmatprep.subr.bf16.mxu0 0
  %140 = vmatpush2.bf16.msra.mxu0 0
  %141 = vmatprep.subr.bf16.mxu0 0
  %142 = vmatpush2.bf16.msra.mxu0 0
  %143 = vmatprep.subr.bf16.mxu0 0
  %144 = vmatpush2.bf16.msra.mxu0 0
  %145 = vmatprep.subr.bf16.mxu0 0
  %146 = vmatpush2.bf16.msra.mxu0 0
  %147 = vmatprep.subr.bf16.mxu0 0
  %148 = vmatpush2.bf16.msra.mxu0 0
  %149 = vmatprep.subr.bf16.mxu0 0
  %150 = vmatpush2.bf16.msra.mxu0 0
  %151 = vmatprep.subr.bf16.mxu0 0
  %152 = vmatpush2.bf16.msra.mxu0 0
  %153 = vmatprep.mubr.bf16.mxu0 0
  %154 = vmatmul.mubr.bf16.gmra.mxu0 %v55
  %v155 = vpop.f32.mrf.mxu0
  %v156 = vadd.f32 0.0, %v155
  %v157 = vpop.f32.mrf.mxu0
  %v158 = vpop.f32.mrf.mxu0
  %v159 = vadd.f32 0.0, %v158
  %v160 = vpop.f32.mrf.mxu0
  %161 = vdwg.mxu0
  %v162 = vadd.f32 %v103, %v156
  %v163 = vadd.f32 %v104, %v159
  %vm164 = vcmask 64512
  %165 = vst.msk [vmem:[#allocation3] sm:$0xff] %vm164, %v162
  %166 = vst.msk [vmem:[#allocation3 + $0x8] sm:$0xff] %vm164, %v163
  // Predicated region
  $region22: #{lora_attention_forward.3} parent=0 // pred_check
    %p167 = pneg %p18
  $region23: #{lora_attention_forward.3} parent=0 // pred_check_branch
    %169 = sbr.rel (%p167) target = $region25
  $region24: #{lora_attention_forward.3} parent=0 // pred_region
    %v170 = vld [vmem:[#allocation2] sm:$0xff]
    %v171 = vld [vmem:[#allocation2 + $0x8] sm:$0xff]
    %v172 = vld [vmem:[#allocation3] sm:$0xff]
    %v173 = vld [vmem:[#allocation3 + $0x8] sm:$0xff]
    %v174 = vpack.c.bf16 %v173, %v172
    %v175 = vld [vmem:[%s3] sm:$0xf]
    %v177 = vsel %vm164, %v174, 0
    %vm179 = vcmask 1043456
    %v181 = vsel %vm179, %v175, 0
    %183 = vmatprep.subr.bf16.mxu0 0
    %184 = vmatpush1.bf16.msra.mxu0 0
    %185 = vmatprep.subr.bf16.mxu0 0
    %186 = vmatpush1.bf16.msra.mxu0 0
    %187 = vmatprep.subr.bf16.mxu0 0
    %188 = vmatpush1.bf16.msra.mxu0 0
    %189 = vmatprep.subr.bf16.mxu0 0
    %190 = vmatpush1.bf16.msra.mxu0 0
    %191 = vmatprep.subr.bf16.mxu0 0
    %192 = vmatpush1.bf16.msra.mxu0 0
    %193 = vmatprep.subr.bf16.mxu0 0
    %194 = vmatpush1.bf16.msra.mxu0 0
    %195 = vmatprep.subr.bf16.mxu0 0
    %196 = vmatpush1.bf16.msra.mxu0 0
    %197 = vmatprep.subr.bf16.mxu0 0
    %198 = vmatpush1.bf16.msra.mxu0 %v181
    %199 = vmatprep.subr.bf16.mxu0 0
    %200 = vmatpush2.bf16.msra.mxu0 0
    %201 = vmatprep.subr.bf16.mxu0 0
    %202 = vmatpush2.bf16.msra.mxu0 0
    %203 = vmatprep.subr.bf16.mxu0 0
    %204 = vmatpush2.bf16.msra.mxu0 0
    %205 = vmatprep.subr.bf16.mxu0 0
    %206 = vmatpush2.bf16.msra.mxu0 0
    %207 = vmatprep.subr.bf16.mxu0 0
    %208 = vmatpush2.bf16.msra.mxu0 0
    %209 = vmatprep.subr.bf16.mxu0 0
    %210 = vmatpush2.bf16.msra.mxu0 0
    %211 = vmatprep.subr.bf16.mxu0 0
    %212 = vmatpush2.bf16.msra.mxu0 0
    %213 = vmatprep.subr.bf16.mxu0 0
    %214 = vmatpush2.bf16.msra.mxu0 0
    %215 = vmatprep.mubr.bf16.mxu0 0
    %216 = vmatmul.mubr.bf16.gmra.mxu0 %v177
    %v217 = vpop.f32.mrf.mxu0
    %v218 = vadd.f32 0.0, %v217
    %v219 = vpop.f32.mrf.mxu0
    %v220 = vpop.f32.mrf.mxu0
    %v221 = vadd.f32 0.0, %v220
    %v222 = vpop.f32.mrf.mxu0
    %223 = vdwg.mxu0
    %v224 = vadd.f32 %v170, %v218
    %v225 = vadd.f32 %v171, %v221
    %v226 = vpack.c.bf16 %v225, %v224
    %v228 = vunpack.c.l.b16 %v226
    %v229 = vunpack.c.h.b16 %v226
    %v230 = vpack.c.b16 %v228, %v228
    %v231 = vpack.c.b16 %v229, %v229
    %vm234 = vcmask 781312
    %235 = vst.msk [vmem:[%s4] sm:$0xf] %vm234, %v230
    %236 = vst.msk [vmem:[%s4 + $0x4] sm:$0xf] %vm234, %v231
  $region25: #{lora_attention_forward.3} parent=0 // pred_fallthru
    _
  // Predicated region
  $region26: #{lora_attention_forward.3} parent=0 // pred_check
    _
  $region27: #{lora_attention_forward.3} parent=0 // pred_check_branch
    %238 = sbr.rel (0) target = $region29
  $region28: #{lora_attention_forward.3} parent=0 // pred_region
    _
  $region29: #{lora_attention_forward.3} parent=0 // pred_fallthru
    _
  // Predicated region
  $region30: #{lora_attention_forward.3} parent=0 // pred_check
    _
  $region31: #{lora_attention_forward.3} parent=0 // pred_check_branch
    %240 = sbr.rel (0) target = $region33
  $region32: #{lora_attention_forward.3} parent=0 // pred_region
    _
  $region33: #{lora_attention_forward.3} parent=0 // pred_fallthru
    _

// kernel: lora_attention_forward.5
$region0: #{lora_attention_forward.5}
  #allocation0 [shape = 'u32[]', space=smem, size = 0x4, offset = 0x4, fixed_abs, tag = 'smem constant byte address 0x4 - core index']
  #allocation1 [shape = 'u32[144,128]{1,0:T(1,128)}', space=vmem, size = 0x12000, scoped, tag = 'internal scratch']
  #allocation2 [shape = 'f32[16,32]{1,0:T(8,128)}', space=vmem, size = 0x2000, scoped, tag = 'scratch operand']
  #allocation3 [shape = 'f32[16,8]{1,0:T(8,128)}', space=vmem, size = 0x2000, scoped, tag = 'scratch operand']
  %s0 = inlined_call_operand.vmem [shape: bf16[16,32], index: 0, kind: input, shape index: {}]
  %s1 = inlined_call_operand.vmem [shape: bf16[32,32], index: 1, kind: input, shape index: {}]
  %s2 = inlined_call_operand.vmem [shape: bf16[32,8], index: 2, kind: input, shape index: {}]
  %s3 = inlined_call_operand.vmem [shape: bf16[8,32], index: 3, kind: input, shape index: {}]
  %s4 = inlined_call_operand.vmem [shape: f32[1,32], index: 4, kind: input, shape index: {}]
  %s5 = inlined_call_operand.hbm [shape: f32[16,32], index: 5, kind: output, shape index: {}]
  %s6 = sld [smem:[#allocation0]]
  $region38: #{lora_attention_forward.5} parent=0
    _
  %s8 = ssub.s32 1, %s6
  %s9 = scalar_select 0, %s8, %s6
  $region1: #{lora_attention_forward.5} parent=0
    #allocation4 [shape = 'u8[8192]{0}', space=vmem, size = 0x2000, scoped, tag = 'output window, operand 0, single buffered']
    #allocation5 [shape = 's32[1]{0}', space=sflag, size = 0x4, scoped, tag = 'scoped memory for lora_attention_forward.5']
    %10 = vsyncpa [#allocation5], 0
    // Predicated region
    $region2: #{lora_attention_forward.5} parent=1 // pred_check
      _
    $region3: #{lora_attention_forward.5} parent=1 // pred_check_branch
      %12 = sbr.rel (0) target = $region5
    $region4: #{lora_attention_forward.5} parent=1 // pred_region
      _
    $region5: #{lora_attention_forward.5} parent=1 // pred_fallthru
      _
    // Predicated region
    $region6: #{lora_attention_forward.5} parent=1 // pred_check
      _
    $region7: #{lora_attention_forward.5} parent=1 // pred_check_branch
      %14 = sbr.rel (0) target = $region9
    $region8: #{lora_attention_forward.5} parent=1 // pred_region
      _
    $region9: #{lora_attention_forward.5} parent=1 // pred_fallthru
      _
    // Predicated region
    $region10: #{lora_attention_forward.5} parent=1 // pred_check
      _
    $region11: #{lora_attention_forward.5} parent=1 // pred_check_branch
      %16 = sbr.rel (0) target = $region13
    $region12: #{lora_attention_forward.5} parent=1 // pred_region
      _
    $region13: #{lora_attention_forward.5} parent=1 // pred_fallthru
      _
    // Predicated region
    $region14: #{lora_attention_forward.5} parent=1 // pred_check
      _
    $region15: #{lora_attention_forward.5} parent=1 // pred_check_branch
      %18 = sbr.rel (0) target = $region17
    $region16: #{lora_attention_forward.5} parent=1 // pred_region
      _
    $region17: #{lora_attention_forward.5} parent=1 // pred_fallthru
      _
    // Predicated region
    $region18: #{lora_attention_forward.5} parent=1 // pred_check
      _
    $region19: #{lora_attention_forward.5} parent=1 // pred_check_branch
      %20 = sbr.rel (0) target = $region21
    $region20: #{lora_attention_forward.5} parent=1 // pred_region
      _
    $region21: #{lora_attention_forward.5} parent=1 // pred_fallthru
      _
    %p22 = scmp.eq.s32.totalorder 0, 0
    // Predicated region
    $region22: #{lora_attention_forward.5} parent=1 // pred_check
      %p23 = pneg %p22
    $region23: #{lora_attention_forward.5} parent=1 // pred_check_branch
      %25 = sbr.rel (%p23) target = $region25
    $region24: #{lora_attention_forward.5} parent=1 // pred_region
      %vm26 = vcmask 261120
      %27 = vst.msk [vmem:[#allocation2] sm:$0xff] %vm26, 0.0
      %28 = vst.msk [vmem:[#allocation2 + $0x8] sm:$0xff] %vm26, 0.0
      %vm29 = vcmask 64512
      %30 = vst.msk [vmem:[#allocation3] sm:$0xff] %vm29, 0.0
      %31 = vst.msk [vmem:[#allocation3 + $0x8] sm:$0xff] %vm29, 0.0
    $region25: #{lora_attention_forward.5} parent=1 // pred_fallthru
      _
    %v32 = vld [vmem:[%s0] sm:$0xf]
    %v33 = vld [vmem:[%s0 + $0x4] sm:$0xf]
    %v34 = vld [vmem:[#allocation2] sm:$0xff]
    %v35 = vld [vmem:[#allocation2 + $0x8] sm:$0xff]
    %v36 = vld [vmem:[%s1] sm:$0xf]
    %v37 = vld [vmem:[%s1 + $0x4] sm:$0xf]
    %v38 = vld [vmem:[%s1 + $0x8] sm:$0xf]
    %v39 = vld [vmem:[%s1 + $0xc] sm:$0xf]
    %v42 = vunpack.c.l.b16 %v32
    %v43 = vunpack.c.l.b16 %v33
    %v44 = vpack.c.b16 %v43, %v42
    %v49 = vunpack.c.l.b16 %v36
    %v50 = vunpack.c.l.b16 %v37
    %v51 = vunpack.c.l.b16 %v38
    %v52 = vunpack.c.l.b16 %v39
    %v53 = vpack.c.b16 %v50, %v49
    %v54 = vpack.c.b16 %v52, %v51
    %vm57 = vcmask 261120
    %v59 = vsel %vm57, %v44, 0
    %61 = vmatprep.subr.bf16.mxu0 0
    %62 = vmatpush1.bf16.msra.mxu0 0
    %63 = vmatprep.subr.bf16.mxu0 0
    %64 = vmatpush1.bf16.msra.mxu0 0
    %65 = vmatprep.subr.bf16.mxu0 0
    %66 = vmatpush1.bf16.msra.mxu0 0
    %67 = vmatprep.subr.bf16.mxu0 0
    %68 = vmatpush1.bf16.msra.mxu0 0
    %69 = vmatprep.subr.bf16.mxu0 0
    %70 = vmatpush1.bf16.msra.mxu0 0
    %71 = vmatprep.subr.bf16.mxu0 0
    %72 = vmatpush1.bf16.msra.mxu0 0
    %73 = vmatprep.subr.bf16.mxu0 0
    %74 = vmatpush1.bf16.msra.mxu0 %v54
    %75 = vmatprep.subr.bf16.mxu0 0
    %76 = vmatpush1.bf16.msra.mxu0 %v53
    %77 = vmatprep.subr.bf16.mxu0 0
    %78 = vmatpush2.bf16.msra.mxu0 0
    %79 = vmatprep.subr.bf16.mxu0 0
    %80 = vmatpush2.bf16.msra.mxu0 0
    %81 = vmatprep.subr.bf16.mxu0 0
    %82 = vmatpush2.bf16.msra.mxu0 0
    %83 = vmatprep.subr.bf16.mxu0 0
    %84 = vmatpush2.bf16.msra.mxu0 0
    %85 = vmatprep.subr.bf16.mxu0 0
    %86 = vmatpush2.bf16.msra.mxu0 0
    %87 = vmatprep.subr.bf16.mxu0 0
    %88 = vmatpush2.bf16.msra.mxu0 0
    %89 = vmatprep.subr.bf16.mxu0 0
    %90 = vmatpush2.bf16.msra.mxu0 0
    %91 = vmatprep.subr.bf16.mxu0 0
    %92 = vmatpush2.bf16.msra.mxu0 0
    %93 = vmatprep.mubr.bf16.mxu0 0
    %94 = vmatmul.mubr.bf16.gmra.mxu0 %v59
    %v95 = vpop.f32.mrf.mxu0
    %v96 = vadd.f32 0.0, %v95
    %v97 = vpop.f32.mrf.mxu0
    %v98 = vpop.f32.mrf.mxu0
    %v99 = vadd.f32 0.0, %v98
    %v100 = vpop.f32.mrf.mxu0
    %101 = vdwg.mxu0
    %v102 = vadd.f32 %v34, %v96
    %v103 = vadd.f32 %v35, %v99
    %104 = vst.msk [vmem:[#allocation2] sm:$0xff] %vm57, %v102
    %105 = vst.msk [vmem:[#allocation2 + $0x8] sm:$0xff] %vm57, %v103
    %v106 = vld [vmem:[#allocation3] sm:$0xff]
    %v107 = vld [vmem:[#allocation3 + $0x8] sm:$0xff]
    %v108 = vld [vmem:[%s2] sm:$0xf]
    %v109 = vld [vmem:[%s2 + $0x4] sm:$0xf]
    %v110 = vld [vmem:[%s2 + $0x8] sm:$0xf]
    %v111 = vld [vmem:[%s2 + $0xc] sm:$0xf]
    %v116 = vunpack.c.l.b16 %v108
    %v117 = vunpack.c.l.b16 %v109
    %v118 = vunpack.c.l.b16 %v110
    %v119 = vunpack.c.l.b16 %v111
    %v120 = vpack.c.b16 %v117, %v116
    %v121 = vpack.c.b16 %v119, %v118
    %124 = vmatprep.subr.bf16.mxu0 0
    %125 = vmatpush1.bf16.msra.mxu0 0
    %126 = vmatprep.subr.bf16.mxu0 0
    %127 = vmatpush1.bf16.msra.mxu0 0
    %128 = vmatprep.subr.bf16.mxu0 0
    %129 = vmatpush1.bf16.msra.mxu0 0
    %130 = vmatprep.subr.bf16.mxu0 0
    %131 = vmatpush1.bf16.msra.mxu0 0
    %132 = vmatprep.subr.bf16.mxu0 0
    %133 = vmatpush1.bf16.msra.mxu0 0
    %134 = vmatprep.subr.bf16.mxu0 0
    %135 = vmatpush1.bf16.msra.mxu0 0
    %136 = vmatprep.subr.bf16.mxu0 0
    %137 = vmatpush1.bf16.msra.mxu0 %v121
    %138 = vmatprep.subr.bf16.mxu0 0
    %139 = vmatpush1.bf16.msra.mxu0 %v120
    %140 = vmatprep.subr.bf16.mxu0 0
    %141 = vmatpush2.bf16.msra.mxu0 0
    %142 = vmatprep.subr.bf16.mxu0 0
    %143 = vmatpush2.bf16.msra.mxu0 0
    %144 = vmatprep.subr.bf16.mxu0 0
    %145 = vmatpush2.bf16.msra.mxu0 0
    %146 = vmatprep.subr.bf16.mxu0 0
    %147 = vmatpush2.bf16.msra.mxu0 0
    %148 = vmatprep.subr.bf16.mxu0 0
    %149 = vmatpush2.bf16.msra.mxu0 0
    %150 = vmatprep.subr.bf16.mxu0 0
    %151 = vmatpush2.bf16.msra.mxu0 0
    %152 = vmatprep.subr.bf16.mxu0 0
    %153 = vmatpush2.bf16.msra.mxu0 0
    %154 = vmatprep.subr.bf16.mxu0 0
    %155 = vmatpush2.bf16.msra.mxu0 0
    %156 = vmatprep.mubr.bf16.mxu0 0
    %157 = vmatmul.mubr.bf16.gmra.mxu0 %v59
    %v158 = vpop.f32.mrf.mxu0
    %v159 = vadd.f32 0.0, %v158
    %v160 = vpop.f32.mrf.mxu0
    %v161 = vpop.f32.mrf.mxu0
    %v162 = vadd.f32 0.0, %v161
    %v163 = vpop.f32.mrf.mxu0
    %164 = vdwg.mxu0
    %v165 = vadd.f32 %v106, %v159
    %v166 = vadd.f32 %v107, %v162
    %vm167 = vcmask 64512
    %168 = vst.msk [vmem:[#allocation3] sm:$0xff] %vm167, %v165
    %169 = vst.msk [vmem:[#allocation3 + $0x8] sm:$0xff] %vm167, %v166
    // Predicated region
    $region26: #{lora_attention_forward.5} parent=1 // pred_check
      %p170 = pneg %p22
    $region27: #{lora_attention_forward.5} parent=1 // pred_check_branch
      %172 = sbr.rel (%p170) target = $region29
    $region28: #{lora_attention_forward.5} parent=1 // pred_region
      %v173 = vld [vmem:[#allocation2] sm:$0xff]
      %v174 = vld [vmem:[#allocation2 + $0x8] sm:$0xff]
      %v175 = vld [vmem:[#allocation3] sm:$0xff]
      %v176 = vld [vmem:[#allocation3 + $0x8] sm:$0xff]
      %v177 = vpack.c.bf16 %v176, %v175
      %v178 = vld [vmem:[%s3] sm:$0xf]
      %v180 = vsel %vm167, %v177, 0
      %vm182 = vcmask 1043456
      %v184 = vsel %vm182, %v178, 0
      %186 = vmatprep.subr.bf16.mxu0 0
      %187 = vmatpush1.bf16.msra.mxu0 0
      %188 = vmatprep.subr.bf16.mxu0 0
      %189 = vmatpush1.bf16.msra.mxu0 0
      %190 = vmatprep.subr.bf16.mxu0 0
      %191 = vmatpush1.bf16.msra.mxu0 0
      %192 = vmatprep.subr.bf16.mxu0 0
      %193 = vmatpush1.bf16.msra.mxu0 0
      %194 = vmatprep.subr.bf16.mxu0 0
      %195 = vmatpush1.bf16.msra.mxu0 0
      %196 = vmatprep.subr.bf16.mxu0 0
      %197 = vmatpush1.bf16.msra.mxu0 0
      %198 = vmatprep.subr.bf16.mxu0 0
      %199 = vmatpush1.bf16.msra.mxu0 0
      %200 = vmatprep.subr.bf16.mxu0 0
      %201 = vmatpush1.bf16.msra.mxu0 %v184
      %202 = vmatprep.subr.bf16.mxu0 0
      %203 = vmatpush2.bf16.msra.mxu0 0
      %204 = vmatprep.subr.bf16.mxu0 0
      %205 = vmatpush2.bf16.msra.mxu0 0
      %206 = vmatprep.subr.bf16.mxu0 0
      %207 = vmatpush2.bf16.msra.mxu0 0
      %208 = vmatprep.subr.bf16.mxu0 0
      %209 = vmatpush2.bf16.msra.mxu0 0
      %210 = vmatprep.subr.bf16.mxu0 0
      %211 = vmatpush2.bf16.msra.mxu0 0
      %212 = vmatprep.subr.bf16.mxu0 0
      %213 = vmatpush2.bf16.msra.mxu0 0
      %214 = vmatprep.subr.bf16.mxu0 0
      %215 = vmatpush2.bf16.msra.mxu0 0
      %216 = vmatprep.subr.bf16.mxu0 0
      %217 = vmatpush2.bf16.msra.mxu0 0
      %218 = vmatprep.mubr.bf16.mxu0 0
      %219 = vmatmul.mubr.bf16.gmra.mxu0 %v180
      %v220 = vpop.f32.mrf.mxu0
      %v221 = vadd.f32 0.0, %v220
      %v222 = vpop.f32.mrf.mxu0
      %v223 = vpop.f32.mrf.mxu0
      %v224 = vadd.f32 0.0, %v223
      %v225 = vpop.f32.mrf.mxu0
      %226 = vdwg.mxu0
      %v227 = vadd.f32 %v173, %v221
      %v228 = vadd.f32 %v174, %v224
      %v229 = vld [vmem:[%s4] sm:$0x1]
      %v231 = vlaneseq
      %v232 = vshrl.u32 %v231, 7
      %v233 = vsub.s32 0, %v232
      %v234 = vrot.slane %v229, %v233
      %v236 = vadd.f32 %v227, %v234
      %v237 = vadd.f32 %v228, %v234
      %238 = vst.msk [vmem:[#allocation4] sm:$0xff] %vm57, %v236
      %239 = vst.msk [vmem:[#allocation4 + $0x8] sm:$0xff] %vm57, %v237
    $region29: #{lora_attention_forward.5} parent=1 // pred_fallthru
      _
    // Predicated region
    $region30: #{lora_attention_forward.5} parent=1 // pred_check
      _
    $region31: #{lora_attention_forward.5} parent=1 // pred_check_branch
      %241 = sbr.rel (0) target = $region33
    $region32: #{lora_attention_forward.5} parent=1 // pred_region
      %s243 = ssub.s32 256, 256
      %244 = vsyncadd [#allocation5], %s243
      %s245 = sshll.u32 [#allocation4], 4
      %s246 = int_to_ptr.vmem [resolvable:$true] %s245
      %251 = dma.vmem_to_hbm [thread:$0]  %s246, 256, %s5, [#allocation5], 128, 128, 8
    $region33: #{lora_attention_forward.5} parent=1 // pred_fallthru
      _
    // Predicated region
    $region34: #{lora_attention_forward.5} parent=1 // pred_check
      _
    $region35: #{lora_attention_forward.5} parent=1 // pred_check_branch
      %253 = sbr.rel (0) target = $region37
    $region36: #{lora_attention_forward.5} parent=1 // pred_region
      %254 = dma.done [#allocation5], 256
    $region37: #{lora_attention_forward.5} parent=1 // pred_fallthru
      _
    %255 = vsyncpa [#allocation5], 1

</llo_original>
